<compile_context>
chip_gen: v6e
topology: v6e:2x2x1
jax: 0.10.0
libtpu: 0.0.40
codegen_flags: <defaults>
</compile_context>

<pallas_src>
import math
import functools

import jax
import jax.numpy as jnp
from jax.experimental import pallas as pl
from jax.experimental.pallas import tpu as pltpu


def mha_kernel(q_ref, kv_ref, mask_ref,
               wq_ref, wkv_ref, wo_ref,
               bq_ref, bkv_ref, bo_ref,
               o_ref, *, heads, d_k):
    H = heads
    q2 = q_ref[0]        # (Sq,  D) f32
    kv2 = kv_ref[0]      # (Skv, D) f32
    Sq, D = q2.shape
    Skv = kv2.shape[0]

    # ---- projections as head-batched matmuls --------------------------------
    # Weights arrive head-major: wq_ref (H, D, d_k), wkv_ref (2H, D, d_k) [K;V].
    # Broadcasting the activations over the head axis keeps every contraction a
    # leading-batch matmul: no in-kernel lane slices, transposes or concats.
    q_b = jnp.broadcast_to(q2.astype(jnp.bfloat16), (H, Sq, D))
    kv_b = jnp.broadcast_to(kv2.astype(jnp.bfloat16), (2 * H, Skv, D))

    qh = jnp.einsum('hsd,hdk->hsk', q_b, wq_ref[...],
                    preferred_element_type=jnp.float32) + bq_ref[...]      # (H,Sq,dk)
    kvh = jnp.einsum('hsd,hdk->hsk', kv_b, wkv_ref[...],
                     preferred_element_type=jnp.float32) + bkv_ref[...]    # (2H,Skv,dk)
    kh = kvh[:H]          # (H, Skv, dk)
    vh = kvh[H:]          # (H, Skv, dk)

    # Fold the 1/sqrt(d_k) scale into Q (Sq*d_k elements) instead of the scores.
    qh = qh * (1.0 / math.sqrt(d_k))

    # ---- attention scores for all heads at once ------------------------------
    s = jnp.einsum('hqd,hkd->hqk',
                   qh.astype(jnp.bfloat16), kh.astype(jnp.bfloat16),
                   preferred_element_type=jnp.float32)                     # (H,Sq,Skv)

    # key-padding mask == torch masked_fill(mask == 0, -1e9); applied before the
    # max-subtraction so the softmax stays numerically stable.
    neg = jnp.where(mask_ref[0] == 0.0, -1e9, 0.0)                         # (1, Skv)
    s = s + neg

    s = s - jnp.max(s, axis=-1, keepdims=True)
    p = jnp.exp(s)
    denom = jnp.sum(p, axis=-1, keepdims=True)
    p = p * pl.reciprocal(denom, approx=True)   # divide on EUP slot

    # ---- softmax(QK^T) @ V ----------------------------------------------------
    ctx = jnp.einsum('hqk,hkd->hqd',
                     p.astype(jnp.bfloat16), vh.astype(jnp.bfloat16),
                     preferred_element_type=jnp.float32)                   # (H,Sq,dk)

    # ---- output projection: sum_h head_h @ Wo[h]  (== concat(heads) @ Wo) -----
    tmp = jnp.einsum('hqd,hde->hqe',
                     ctx.astype(jnp.bfloat16), wo_ref[...],
                     preferred_element_type=jnp.float32)                   # (H,Sq,D)
    out = jnp.sum(tmp, axis=0) + bo_ref[...]                               # (Sq, D)

    o_ref[0] = out.astype(o_ref.dtype)


def multi_head_attention(q, kv, params, *, heads, mask=None):
    """SUMBT attention: q (B,Sq,D) slot queries; kv (B,Skv,D) shared K/V input
    (BeliefTracker calls attn(hid_slot, hidden, hidden)); mask (B,1,Skv) 0/1
    key-padding mask or None.  Weights in `params` are pre-transposed (in,out)."""
    B, Sq, D = q.shape
    _, Skv, _ = kv.shape
    H = heads
    d_k = D // H

    if mask is None:
        mask = jnp.ones((B, 1, Skv), jnp.float32)
    mask = mask.astype(jnp.float32)

    # Repack weights head-major once, outside the kernel; bf16 matmul operands,
    # f32 biases / accumulation.
    def head_major(w):                    # (D, D) -> (H, D, d_k)
        return jnp.transpose(w.reshape(D, H, d_k), (1, 0, 2))

    wq3 = head_major(params["wq"]).astype(jnp.bfloat16)                     # (H, D, dk)
    wkv3 = jnp.concatenate([head_major(params["wk"]),
                            head_major(params["wv"])], axis=0
                           ).astype(jnp.bfloat16)                           # (2H, D, dk)
    wo3 = params["wo"].reshape(H, d_k, D).astype(jnp.bfloat16)              # (H, dk, D)

    bq3 = params["bq"].reshape(H, 1, d_k).astype(jnp.float32)
    bkv3 = jnp.concatenate([params["bk"].reshape(H, 1, d_k),
                            params["bv"].reshape(H, 1, d_k)], axis=0
                           ).astype(jnp.float32)                            # (2H, 1, dk)
    bo = params["bo"].astype(jnp.float32)                                   # (1, D)

    kernel = functools.partial(mha_kernel, heads=H, d_k=d_k)

    q_spec = pl.BlockSpec((1, Sq, D), lambda b: (b, 0, 0))
    kv_spec = pl.BlockSpec((1, Skv, D), lambda b: (b, 0, 0))
    mask_spec = pl.BlockSpec((1, 1, Skv), lambda b: (b, 0, 0))
    # Grid-invariant index_maps: blocks stay resident across batch steps (no
    # re-DMA).  On v7x, pipeline_mode=pl.Buffered(1) would also drop the second
    # buffer; omitted here for portability.
    wq_spec = pl.BlockSpec((H, D, d_k), lambda b: (0, 0, 0))
    wkv_spec = pl.BlockSpec((2 * H, D, d_k), lambda b: (0, 0, 0))
    wo_spec = pl.BlockSpec((H, d_k, D), lambda b: (0, 0, 0))
    bq_spec = pl.BlockSpec((H, 1, d_k), lambda b: (0, 0, 0))
    bkv_spec = pl.BlockSpec((2 * H, 1, d_k), lambda b: (0, 0, 0))
    bo_spec = pl.BlockSpec((1, D), lambda b: (0, 0))

    out = pl.pallas_call(
        kernel,
        out_shape=jax.ShapeDtypeStruct((B, Sq, D), q.dtype),
        grid_spec=pltpu.PrefetchScalarGridSpec(
            num_scalar_prefetch=0,
            grid=(B,),                                   # >=2 parallel steps feeds both v7x TCs
            in_specs=[q_spec, kv_spec, mask_spec,
                      wq_spec, wkv_spec, wo_spec,
                      bq_spec, bkv_spec, bo_spec],
            out_specs=q_spec,
        ),
        compiler_params=pltpu.CompilerParams(
            dimension_semantics=("parallel",),
            vmem_limit_bytes=32 * 1024 * 1024),
    )(q, kv, mask, wq3, wkv3, wo3, bq3, bkv3, bo)
    return out


def reference_mha(q, k, v, params, *, heads, mask=None):
    """Plain-JAX f32 reference replicating the PyTorch forward (dropout=0)."""
    B, Sq, D = q.shape
    Skv = k.shape[1]
    d_k = D // heads

    def lin(x, w, b):
        return x @ w + b

    qp = lin(q, params["wq"], params["bq"]).reshape(B, Sq, heads, d_k).transpose(0, 2, 1, 3)
    kp = lin(k, params["wk"], params["bk"]).reshape(B, Skv, heads, d_k).transpose(0, 2, 1, 3)
    vp = lin(v, params["wv"], params["bv"]).reshape(B, Skv, heads, d_k).transpose(0, 2, 1, 3)

    scores = jnp.einsum("bhqd,bhkd->bhqk", qp, kp) / math.sqrt(d_k)
    if mask is not None:
        scores = jnp.where(mask[:, None, :, :] == 0, -1e9, scores)
    scores = jax.nn.softmax(scores, axis=-1)
    out = jnp.einsum("bhqk,bhkd->bhqd", scores, vp)
    concat = out.transpose(0, 2, 1, 3).reshape(B, Sq, D)
    return lin(concat, params["wo"], params["bo"])


def init_params(key, d_model):
    """Deterministic synthetic parameters.  Weights stored pre-transposed as (in, out)."""
    keys = jax.random.split(key, 8)
    scale = 0.02
    p = {}
    for i, name in enumerate(["wq", "wk", "wv", "wo"]):
        p[name] = scale * jax.random.normal(keys[i], (d_model, d_model), jnp.float32)
    for i, name in enumerate(["bq", "bk", "bv", "bo"]):
        p[name] = scale * jax.random.normal(keys[4 + i], (1, d_model), jnp.float32)
    return p


if __name__ == "__main__":
    B, SQ, SKV, D, HEADS = 2, 8, 8, 32, 4

    key = jax.random.PRNGKey(0)
    kq, kkv, kp = jax.random.split(key, 3)
    q = jax.random.normal(kq, (B, SQ, D), jnp.float32)       # slot queries (hid_slot-like)
    kv = jax.random.normal(kkv, (B, SKV, D), jnp.float32)    # utterance hidden (k == v)
    params = init_params(kp, D)

    # key-padding mask like BeliefTracker's (input_ids > 0): pad last 2 keys of batch 0
    mask = jnp.ones((B, 1, SKV), jnp.float32)
    mask = mask.at[0, 0, SKV - 2:].set(0.0)

    out = multi_head_attention(q, kv, params, heads=HEADS, mask=mask)
    out = jax.block_until_ready(out)

    ref = reference_mha(q, kv, kv, params, heads=HEADS, mask=mask)
    assert out.shape == (B, SQ, D)
    # bf16 matmul operands (f32 accumulation) + approx reciprocal -> slightly
    # looser tolerance than the all-f32 v1, per the performance review.
    assert jnp.allclose(out, ref, atol=5e-3, rtol=5e-2), "Pallas output mismatch vs reference"

    print("KERNEL_OK")
</pallas_src>

<mosaic_0001>
module attributes {stable_mosaic.version = 11 : i64} {
  func.func @mha_kernel(%arg0: i32, %arg1: memref<1x8x32xf32, #tpu.memory_space<vmem>>, %arg2: memref<1x8x32xf32, #tpu.memory_space<vmem>>, %arg3: memref<1x1x8xf32, #tpu.memory_space<vmem>>, %arg4: memref<4x32x8xbf16, #tpu.memory_space<vmem>>, %arg5: memref<8x32x8xbf16, #tpu.memory_space<vmem>>, %arg6: memref<4x8x32xbf16, #tpu.memory_space<vmem>>, %arg7: memref<4x1x8xf32, #tpu.memory_space<vmem>>, %arg8: memref<8x1x8xf32, #tpu.memory_space<vmem>>, %arg9: memref<1x32xf32, #tpu.memory_space<vmem>>, %arg10: memref<1x8x32xf32, #tpu.memory_space<vmem>>) attributes {dimension_semantics = [#tpu.dimension_semantics<parallel>], iteration_bounds = array<i64: 2>, scalar_prefetch = 0 : i64, scratch_operands = 0 : i64, tpu.core_type = #tpu.core_type<tc>, window_params = [{transform_indices = @transform_0, window_bounds = array<i64: 1, 8, 32>}, {transform_indices = @transform_1, window_bounds = array<i64: 1, 8, 32>}, {transform_indices = @transform_2, window_bounds = array<i64: 1, 1, 8>}, {pipeline_mode = #tpu.pipeline_mode<synchronous>, transform_indices = @transform_3, window_bounds = array<i64: 4, 32, 8>}, {pipeline_mode = #tpu.pipeline_mode<synchronous>, transform_indices = @transform_4, window_bounds = array<i64: 8, 32, 8>}, {pipeline_mode = #tpu.pipeline_mode<synchronous>, transform_indices = @transform_5, window_bounds = array<i64: 4, 8, 32>}, {pipeline_mode = #tpu.pipeline_mode<synchronous>, transform_indices = @transform_6, window_bounds = array<i64: 4, 1, 8>}, {pipeline_mode = #tpu.pipeline_mode<synchronous>, transform_indices = @transform_7, window_bounds = array<i64: 8, 1, 8>}, {pipeline_mode = #tpu.pipeline_mode<synchronous>, transform_indices = @transform_8, window_bounds = array<i64: 1, 32>}, {transform_indices = @transform_9, window_bounds = array<i64: 1, 8, 32>}]} {
    %c0 = arith.constant 0 : index
    %c0_0 = arith.constant 0 : index
    %c0_1 = arith.constant 0 : index
    %0 = vector.load %arg1[%c0, %c0_0, %c0_1] : memref<1x8x32xf32, #tpu.memory_space<vmem>>, vector<1x8x32xf32>
    %1 = vector.shape_cast %0 : vector<1x8x32xf32> to vector<8x32xf32>
    %c0_2 = arith.constant 0 : index
    %c0_3 = arith.constant 0 : index
    %c0_4 = arith.constant 0 : index
    %2 = vector.load %arg2[%c0_2, %c0_3, %c0_4] : memref<1x8x32xf32, #tpu.memory_space<vmem>>, vector<1x8x32xf32>
    %3 = vector.shape_cast %2 : vector<1x8x32xf32> to vector<8x32xf32>
    %4 = arith.truncf %1 : vector<8x32xf32> to vector<8x32xbf16>
    %5 = vector.shape_cast %4 : vector<8x32xbf16> to vector<1x8x32xbf16>
    %6 = vector.broadcast %5 : vector<1x8x32xbf16> to vector<4x8x32xbf16>
    %7 = arith.truncf %3 : vector<8x32xf32> to vector<8x32xbf16>
    %8 = vector.shape_cast %7 : vector<8x32xbf16> to vector<1x8x32xbf16>
    %9 = vector.broadcast %8 : vector<1x8x32xbf16> to vector<8x8x32xbf16>
    %c0_5 = arith.constant 0 : index
    %c0_6 = arith.constant 0 : index
    %c0_7 = arith.constant 0 : index
    %10 = vector.load %arg4[%c0_5, %c0_6, %c0_7] : memref<4x32x8xbf16, #tpu.memory_space<vmem>>, vector<4x32x8xbf16>
    "tpu.trace_start"() <{level = 10 : i32, message = "hsd,hdk->hsk"}> : () -> ()
    %cst = arith.constant dense<0.000000e+00> : vector<4x8x8xf32>
    %11 = tpu.matmul %6, %10, %cst {dimension_numbers = #tpu.dot_dimension_numbers<[2], [1], [1], [2], [0, 0, 0, 1, 1, 2], [0], [0]>} : vector<4x8x32xbf16>, vector<4x32x8xbf16>, vector<4x8x8xf32> -> vector<4x8x8xf32>
    "tpu.trace_stop"() : () -> ()
    %c0_8 = arith.constant 0 : index
    %c0_9 = arith.constant 0 : index
    %c0_10 = arith.constant 0 : index
    %12 = vector.load %arg7[%c0_8, %c0_9, %c0_10] : memref<4x1x8xf32, #tpu.memory_space<vmem>>, vector<4x1x8xf32>
    %13 = vector.broadcast %12 : vector<4x1x8xf32> to vector<4x8x8xf32>
    %14 = arith.addf %11, %13 : vector<4x8x8xf32>
    %c0_11 = arith.constant 0 : index
    %c0_12 = arith.constant 0 : index
    %c0_13 = arith.constant 0 : index
    %15 = vector.load %arg5[%c0_11, %c0_12, %c0_13] : memref<8x32x8xbf16, #tpu.memory_space<vmem>>, vector<8x32x8xbf16>
    "tpu.trace_start"() <{level = 10 : i32, message = "hsd,hdk->hsk"}> : () -> ()
    %cst_14 = arith.constant dense<0.000000e+00> : vector<8x8x8xf32>
    %16 = tpu.matmul %9, %15, %cst_14 {dimension_numbers = #tpu.dot_dimension_numbers<[2], [1], [1], [2], [0, 0, 0, 1, 1, 2], [0], [0]>} : vector<8x8x32xbf16>, vector<8x32x8xbf16>, vector<8x8x8xf32> -> vector<8x8x8xf32>
    "tpu.trace_stop"() : () -> ()
    %c0_15 = arith.constant 0 : index
    %c0_16 = arith.constant 0 : index
    %c0_17 = arith.constant 0 : index
    %17 = vector.load %arg8[%c0_15, %c0_16, %c0_17] : memref<8x1x8xf32, #tpu.memory_space<vmem>>, vector<8x1x8xf32>
    %18 = vector.broadcast %17 : vector<8x1x8xf32> to vector<8x8x8xf32>
    %19 = arith.addf %16, %18 : vector<8x8x8xf32>
    %20 = vector.extract_strided_slice %19 {offsets = [0, 0, 0], sizes = [4, 8, 8], strides = [1, 1, 1]} : vector<8x8x8xf32> to vector<4x8x8xf32>
    %21 = vector.extract_strided_slice %19 {offsets = [4, 0, 0], sizes = [4, 8, 8], strides = [1, 1, 1]} : vector<8x8x8xf32> to vector<4x8x8xf32>
    %cst_18 = arith.constant 0.353553385 : f32
    %22 = vector.broadcast %cst_18 : f32 to vector<4x8x8xf32>
    %23 = arith.mulf %14, %22 : vector<4x8x8xf32>
    %24 = arith.truncf %23 : vector<4x8x8xf32> to vector<4x8x8xbf16>
    %25 = arith.truncf %20 : vector<4x8x8xf32> to vector<4x8x8xbf16>
    "tpu.trace_start"() <{level = 10 : i32, message = "hqd,hkd->hqk"}> : () -> ()
    %cst_19 = arith.constant dense<0.000000e+00> : vector<4x8x8xf32>
    %26 = tpu.matmul %24, %25, %cst_19 {dimension_numbers = #tpu.dot_dimension_numbers<[2], [2], [1], [1], [0, 0, 0, 1, 1, 1], [0], [0]>} : vector<4x8x8xbf16>, vector<4x8x8xbf16>, vector<4x8x8xf32> -> vector<4x8x8xf32>
    "tpu.trace_stop"() : () -> ()
    %c0_20 = arith.constant 0 : index
    %c0_21 = arith.constant 0 : index
    %c0_22 = arith.constant 0 : index
    %27 = vector.load %arg3[%c0_20, %c0_21, %c0_22] : memref<1x1x8xf32, #tpu.memory_space<vmem>>, vector<1x1x8xf32>
    %28 = vector.shape_cast %27 : vector<1x1x8xf32> to vector<1x8xf32>
    %cst_23 = arith.constant 0.000000e+00 : f32
    %29 = vector.broadcast %cst_23 : f32 to vector<1x8xf32>
    %30 = arith.cmpf oeq, %28, %29 : vector<1x8xf32>
    %cst_24 = arith.constant -1.000000e+09 : f32
    %cst_25 = arith.constant 0.000000e+00 : f32
    %31 = vector.broadcast %cst_24 : f32 to vector<1x8xf32>
    %32 = vector.broadcast %cst_25 : f32 to vector<1x8xf32>
    %33 = arith.select %30, %31, %32 : vector<1x8xi1>, vector<1x8xf32>
    %34 = vector.shape_cast %33 : vector<1x8xf32> to vector<1x1x8xf32>
    %35 = vector.broadcast %34 : vector<1x1x8xf32> to vector<4x8x8xf32>
    %36 = arith.addf %26, %35 : vector<4x8x8xf32>
    %cst_26 = arith.constant dense<0xFF800000> : vector<4x8xf32>
    %37 = vector.multi_reduction <maximumf>, %36, %cst_26 [2] : vector<4x8x8xf32> to vector<4x8xf32>
    %38 = vector.shape_cast %37 : vector<4x8xf32> to vector<4x8x1xf32>
    %39 = vector.broadcast %38 : vector<4x8x1xf32> to vector<4x8x8xf32>
    %40 = arith.subf %36, %39 : vector<4x8x8xf32>
    %41 = math.exp %40 : vector<4x8x8xf32>
    %cst_27 = arith.constant dense<0.000000e+00> : vector<4x8xf32>
    %42 = vector.multi_reduction <add>, %41, %cst_27 [2] : vector<4x8x8xf32> to vector<4x8xf32>
    %43 = vector.shape_cast %42 : vector<4x8xf32> to vector<4x8x1xf32>
    %44 = tpu.reciprocal %43 {approx = true} : vector<4x8x1xf32> -> vector<4x8x1xf32>
    %45 = vector.broadcast %44 : vector<4x8x1xf32> to vector<4x8x8xf32>
    %46 = arith.mulf %41, %45 : vector<4x8x8xf32>
    %47 = arith.truncf %46 : vector<4x8x8xf32> to vector<4x8x8xbf16>
    %48 = arith.truncf %21 : vector<4x8x8xf32> to vector<4x8x8xbf16>
    "tpu.trace_start"() <{level = 10 : i32, message = "hqk,hkd->hqd"}> : () -> ()
    %cst_28 = arith.constant dense<0.000000e+00> : vector<4x8x8xf32>
    %49 = tpu.matmul %47, %48, %cst_28 {dimension_numbers = #tpu.dot_dimension_numbers<[2], [1], [1], [2], [0, 0, 0, 1, 1, 2], [0], [0]>} : vector<4x8x8xbf16>, vector<4x8x8xbf16>, vector<4x8x8xf32> -> vector<4x8x8xf32>
    "tpu.trace_stop"() : () -> ()
    %50 = arith.truncf %49 : vector<4x8x8xf32> to vector<4x8x8xbf16>
    %c0_29 = arith.constant 0 : index
    %c0_30 = arith.constant 0 : index
    %c0_31 = arith.constant 0 : index
    %51 = vector.load %arg6[%c0_29, %c0_30, %c0_31] : memref<4x8x32xbf16, #tpu.memory_space<vmem>>, vector<4x8x32xbf16>
    "tpu.trace_start"() <{level = 10 : i32, message = "hqd,hde->hqe"}> : () -> ()
    %cst_32 = arith.constant dense<0.000000e+00> : vector<4x8x32xf32>
    %52 = tpu.matmul %50, %51, %cst_32 {dimension_numbers = #tpu.dot_dimension_numbers<[2], [1], [1], [2], [0, 0, 0, 1, 1, 2], [0], [0]>} : vector<4x8x8xbf16>, vector<4x8x32xbf16>, vector<4x8x32xf32> -> vector<4x8x32xf32>
    "tpu.trace_stop"() : () -> ()
    %cst_33 = arith.constant dense<0.000000e+00> : vector<8x32xf32>
    %53 = vector.multi_reduction <add>, %52, %cst_33 [0] : vector<4x8x32xf32> to vector<8x32xf32>
    %c0_34 = arith.constant 0 : index
    %c0_35 = arith.constant 0 : index
    %54 = vector.load %arg9[%c0_34, %c0_35] : memref<1x32xf32, #tpu.memory_space<vmem>>, vector<1x32xf32>
    %55 = vector.broadcast %54 : vector<1x32xf32> to vector<8x32xf32>
    %56 = arith.addf %53, %55 : vector<8x32xf32>
    %c0_36 = arith.constant 0 : index
    %c0_37 = arith.constant 0 : index
    %c0_38 = arith.constant 0 : index
    %57 = vector.load %arg10[%c0_36, %c0_37, %c0_38] : memref<1x8x32xf32, #tpu.memory_space<vmem>>, vector<1x8x32xf32>
    %58 = vector.shape_cast %57 : vector<1x8x32xf32> to vector<8x32xf32>
    %59 = vector.shape_cast %56 : vector<8x32xf32> to vector<1x8x32xf32>
    tpu.vector_store %arg10[%c0_36, %c0_37, %c0_38], %59 {strides = array<i32>} : memref<1x8x32xf32, #tpu.memory_space<vmem>>, vector<1x8x32xf32>,
    return
  }
  func.func @transform_0(%arg0: i32) -> (i32, i32, i32) {
    %c0_i32 = arith.constant 0 : i32
    %c0_i32_0 = arith.constant 0 : i32
    %c0_i32_1 = arith.constant 0 : i32
    return %arg0, %c0_i32, %c0_i32_0 : i32, i32, i32
  }
  func.func @transform_1(%arg0: i32) -> (i32, i32, i32) {
    %c0_i32 = arith.constant 0 : i32
    %c0_i32_0 = arith.constant 0 : i32
    %c0_i32_1 = arith.constant 0 : i32
    return %arg0, %c0_i32, %c0_i32_0 : i32, i32, i32
  }
  func.func @transform_2(%arg0: i32) -> (i32, i32, i32) {
    %c0_i32 = arith.constant 0 : i32
    %c0_i32_0 = arith.constant 0 : i32
    %c0_i32_1 = arith.constant 0 : i32
    return %arg0, %c0_i32, %c0_i32_0 : i32, i32, i32
  }
  func.func @transform_3(%arg0: i32) -> (i32, i32, i32) {
    %c0_i32 = arith.constant 0 : i32
    %c0_i32_0 = arith.constant 0 : i32
    %c0_i32_1 = arith.constant 0 : i32
    %c0_i32_2 = arith.constant 0 : i32
    return %c0_i32, %c0_i32_0, %c0_i32_1 : i32, i32, i32
  }
  func.func @transform_4(%arg0: i32) -> (i32, i32, i32) {
    %c0_i32 = arith.constant 0 : i32
    %c0_i32_0 = arith.constant 0 : i32
    %c0_i32_1 = arith.constant 0 : i32
    %c0_i32_2 = arith.constant 0 : i32
    return %c0_i32, %c0_i32_0, %c0_i32_1 : i32, i32, i32
  }
  func.func @transform_5(%arg0: i32) -> (i32, i32, i32) {
    %c0_i32 = arith.constant 0 : i32
    %c0_i32_0 = arith.constant 0 : i32
    %c0_i32_1 = arith.constant 0 : i32
    %c0_i32_2 = arith.constant 0 : i32
    return %c0_i32, %c0_i32_0, %c0_i32_1 : i32, i32, i32
  }
  func.func @transform_6(%arg0: i32) -> (i32, i32, i32) {
    %c0_i32 = arith.constant 0 : i32
    %c0_i32_0 = arith.constant 0 : i32
    %c0_i32_1 = arith.constant 0 : i32
    %c0_i32_2 = arith.constant 0 : i32
    return %c0_i32, %c0_i32_0, %c0_i32_1 : i32, i32, i32
  }
  func.func @transform_7(%arg0: i32) -> (i32, i32, i32) {
    %c0_i32 = arith.constant 0 : i32
    %c0_i32_0 = arith.constant 0 : i32
    %c0_i32_1 = arith.constant 0 : i32
    %c0_i32_2 = arith.constant 0 : i32
    return %c0_i32, %c0_i32_0, %c0_i32_1 : i32, i32, i32
  }
  func.func @transform_8(%arg0: i32) -> (i32, i32) {
    %c0_i32 = arith.constant 0 : i32
    %c0_i32_0 = arith.constant 0 : i32
    %c0_i32_1 = arith.constant 0 : i32
    return %c0_i32, %c0_i32_0 : i32, i32
  }
  func.func @transform_9(%arg0: i32) -> (i32, i32, i32) {
    %c0_i32 = arith.constant 0 : i32
    %c0_i32_0 = arith.constant 0 : i32
    %c0_i32_1 = arith.constant 0 : i32
    return %arg0, %c0_i32, %c0_i32_0 : i32, i32, i32
  }
}

</mosaic_0001>

<llo_original>
// kernel: tpu_custom_call.1
$region0: #{tpu_custom_call.1}
  #allocation0 [shape = 'u32[]', space=smem, size = 0x4, offset = 0x4, fixed_abs, tag = 'smem constant byte address 0x4 - core index']
  #allocation1 [shape = 'u32[144,128]{1,0:T(1,128)}', space=vmem, size = 0x12000, scoped, tag = 'internal scratch']
  %s0 = inlined_call_operand.vmem [shape: f32[2,8,32], index: 0, kind: input, shape index: {}]
  %s1 = inlined_call_operand.vmem [shape: f32[2,8,32], index: 1, kind: input, shape index: {}]
  %s2 = inlined_call_operand.vmem [shape: f32[2,1,8], index: 2, kind: input, shape index: {}]
  %s3 = inlined_call_operand.vmem [shape: bf16[4,32,8], index: 3, kind: input, shape index: {}]
  %s4 = inlined_call_operand.vmem [shape: bf16[8,32,8], index: 4, kind: input, shape index: {}]
  %s5 = inlined_call_operand.vmem [shape: bf16[4,8,32], index: 5, kind: input, shape index: {}]
  %s6 = inlined_call_operand.vmem [shape: f32[4,1,8], index: 6, kind: input, shape index: {}]
  %s7 = inlined_call_operand.vmem [shape: f32[8,1,8], index: 7, kind: input, shape index: {}]
  %s8 = inlined_call_operand.vmem [shape: f32[1,32], index: 8, kind: input, shape index: {}]
  %s9 = inlined_call_operand.hbm [shape: f32[2,8,32], index: 9, kind: output, shape index: {}]
  %s10 = sld [smem:[#allocation0]]
  $region69: #{tpu_custom_call.1} parent=0
    _
  %s12 = ssub.s32 1, %s10
  %s13 = scalar_select 0, %s12, %s10
  $region1: #{tpu_custom_call.1} parent=0
    #allocation2 [shape = 'u8[8192]{0}', space=vmem, size = 0x2000, scoped, tag = 'output window, operand 0']
    #allocation3 [shape = 's32[2]{0}', space=sflag, size = 0x8, scoped, tag = 'scoped memory for tpu_custom_call.1']
    %14 = vsyncpa [#allocation3], 0
    %s15 = scalar_lea.sflag [#allocation3], 1
    %16 = vsyncpa %s15, 0
    loop: start=0, step=1, limit=4
    $region2: #{tpu_custom_call.1} parent=1 // loop_pre_header
      _
    $region3: #{tpu_custom_call.1} parent=1 // loop_header
      %s18 = sphi 0, %s22
      %p19 = scmp.ge.s32.totalorder %s18, 4
      %s28 = sphi 0, %s30
      %s31 = sphi 0, %s28
      %s32 = sphi 0, %s31
      %s48 = sphi 0, %s32
      %s54 = sphi 0, %s56
      %s57 = sphi 0, %s54
      %s58 = sphi 0, %s57
      %s74 = sphi 0, %s58
      %s80 = sphi 0, %s82
      %s83 = sphi 0, %s80
      %s84 = sphi 0, %s83
      %s100 = sphi 0, %s84
      %s104 = sphi 0, %s104
      %s106 = sphi 0, %s104
      %s107 = sphi 0, %s106
      %s121 = sphi 0, %s107
      %s125 = sphi 0, %s125
      %s127 = sphi 0, %s125
      %s128 = sphi 0, %s127
      %s142 = sphi 0, %s128
      %s146 = sphi 0, %s146
      %s148 = sphi 0, %s146
      %s149 = sphi 0, %s148
      %s163 = sphi 0, %s149
      %s167 = sphi 0, %s167
      %s169 = sphi 0, %s167
      %s170 = sphi 0, %s169
      %s184 = sphi 0, %s170
      %s188 = sphi 0, %s188
      %s190 = sphi 0, %s188
      %s191 = sphi 0, %s190
      %s205 = sphi 0, %s191
      %s209 = sphi 0, %s209
      %s211 = sphi 0, %s209
      %s212 = sphi 0, %s211
      %s226 = sphi 0, %s212
      %s232 = sphi 0, %s234
      %s235 = sphi 0, %s232
      %s236 = sphi 0, %s235
      %s252 = sphi 0, %s236
    $region4: #{tpu_custom_call.1} parent=1 // loop_header_branch
      %21 = sbr.rel (%p19) target = $region8
    $region5: #{tpu_custom_call.1} parent=1 // loop_body
      %s23 = ssub.s32 %s18, 1
      %s24 = ssub.s32 %s18, 2
      %s25 = sadd.s32 %s18, 1
      %s26 = ssub.s32 %s18, %s25
      %p27 = scmp.eq.s32.totalorder %s26, 0
      %s29 = sadd.s32 %s28, 1
      %s30 = scalar_select %p27, %s28, %s29
      %p33 = pneg %p27
      %p34 = scmp.eq.s32.totalorder %s18, 1
      %p35 = por %p33, %p34
      %p36 = scmp.ne.s32.totalorder %s28, %s31
      %p37 = scmp.eq.s32.totalorder %s18, 0
      %p38 = por %p36, %p37
      %p39 = scmp.ne.s32.totalorder %s28, %s31
      %p40 = scmp.eq.s32.totalorder %s23, 1
      %p41 = por %p39, %p40
      %p42 = scmp.ne.s32.totalorder %s31, %s32
      %p43 = scmp.eq.s32.totalorder %s23, 0
      %p44 = por %p42, %p43
      %p45 = scmp.ne.s32.totalorder %s31, %s32
      %p46 = scmp.eq.s32.totalorder %s24, 1
      %p47 = por %p45, %p46
      %p49 = scmp.ne.s32.totalorder %s32, %s48
      %p50 = scmp.eq.s32.totalorder %s24, 0
      %p51 = por %p49, %p50
      %s52 = ssub.s32 %s18, %s25
      %p53 = scmp.eq.s32.totalorder %s52, 0
      %s55 = sadd.s32 %s54, 1
      %s56 = scalar_select %p53, %s54, %s55
      %p59 = pneg %p53
      %p60 = scmp.eq.s32.totalorder %s18, 1
      %p61 = por %p59, %p60
      %p62 = scmp.ne.s32.totalorder %s54, %s57
      %p63 = scmp.eq.s32.totalorder %s18, 0
      %p64 = por %p62, %p63
      %p65 = scmp.ne.s32.totalorder %s54, %s57
      %p66 = scmp.eq.s32.totalorder %s23, 1
      %p67 = por %p65, %p66
      %p68 = scmp.ne.s32.totalorder %s57, %s58
      %p69 = scmp.eq.s32.totalorder %s23, 0
      %p70 = por %p68, %p69
      %p71 = scmp.ne.s32.totalorder %s57, %s58
      %p72 = scmp.eq.s32.totalorder %s24, 1
      %p73 = por %p71, %p72
      %p75 = scmp.ne.s32.totalorder %s58, %s74
      %p76 = scmp.eq.s32.totalorder %s24, 0
      %p77 = por %p75, %p76
      %s78 = ssub.s32 %s18, %s25
      %p79 = scmp.eq.s32.totalorder %s78, 0
      %s81 = sadd.s32 %s80, 1
      %s82 = scalar_select %p79, %s80, %s81
      %p85 = pneg %p79
      %p86 = scmp.eq.s32.totalorder %s18, 1
      %p87 = por %p85, %p86
      %p88 = scmp.ne.s32.totalorder %s80, %s83
      %p89 = scmp.eq.s32.totalorder %s18, 0
      %p90 = por %p88, %p89
      %p91 = scmp.ne.s32.totalorder %s80, %s83
      %p92 = scmp.eq.s32.totalorder %s23, 1
      %p93 = por %p91, %p92
      %p94 = scmp.ne.s32.totalorder %s83, %s84
      %p95 = scmp.eq.s32.totalorder %s23, 0
      %p96 = por %p94, %p95
      %p97 = scmp.ne.s32.totalorder %s83, %s84
      %p98 = scmp.eq.s32.totalorder %s24, 1
      %p99 = por %p97, %p98
      %p101 = scmp.ne.s32.totalorder %s84, %s100
      %p102 = scmp.eq.s32.totalorder %s24, 0
      %p103 = por %p101, %p102
      %s105 = sadd.s32 %s104, 1
      %p108 = scmp.eq.s32.totalorder %s18, 1
      %p109 = scmp.ne.s32.totalorder %s104, %s106
      %p110 = scmp.eq.s32.totalorder %s18, 0
      %p111 = por %p109, %p110
      %p112 = scmp.ne.s32.totalorder %s104, %s106
      %p113 = scmp.eq.s32.totalorder %s23, 1
      %p114 = por %p112, %p113
      %p115 = scmp.ne.s32.totalorder %s106, %s107
      %p116 = scmp.eq.s32.totalorder %s23, 0
      %p117 = por %p115, %p116
      %p118 = scmp.ne.s32.totalorder %s106, %s107
      %p119 = scmp.eq.s32.totalorder %s24, 1
      %p120 = por %p118, %p119
      %p122 = scmp.ne.s32.totalorder %s107, %s121
      %p123 = scmp.eq.s32.totalorder %s24, 0
      %p124 = por %p122, %p123
      %s126 = sadd.s32 %s125, 1
      %p129 = scmp.eq.s32.totalorder %s18, 1
      %p130 = scmp.ne.s32.totalorder %s125, %s127
      %p131 = scmp.eq.s32.totalorder %s18, 0
      %p132 = por %p130, %p131
      %p133 = scmp.ne.s32.totalorder %s125, %s127
      %p134 = scmp.eq.s32.totalorder %s23, 1
      %p135 = por %p133, %p134
      %p136 = scmp.ne.s32.totalorder %s127, %s128
      %p137 = scmp.eq.s32.totalorder %s23, 0
      %p138 = por %p136, %p137
      %p139 = scmp.ne.s32.totalorder %s127, %s128
      %p140 = scmp.eq.s32.totalorder %s24, 1
      %p141 = por %p139, %p140
      %p143 = scmp.ne.s32.totalorder %s128, %s142
      %p144 = scmp.eq.s32.totalorder %s24, 0
      %p145 = por %p143, %p144
      %s147 = sadd.s32 %s146, 1
      %p150 = scmp.eq.s32.totalorder %s18, 1
      %p151 = scmp.ne.s32.totalorder %s146, %s148
      %p152 = scmp.eq.s32.totalorder %s18, 0
      %p153 = por %p151, %p152
      %p154 = scmp.ne.s32.totalorder %s146, %s148
      %p155 = scmp.eq.s32.totalorder %s23, 1
      %p156 = por %p154, %p155
      %p157 = scmp.ne.s32.totalorder %s148, %s149
      %p158 = scmp.eq.s32.totalorder %s23, 0
      %p159 = por %p157, %p158
      %p160 = scmp.ne.s32.totalorder %s148, %s149
      %p161 = scmp.eq.s32.totalorder %s24, 1
      %p162 = por %p160, %p161
      %p164 = scmp.ne.s32.totalorder %s149, %s163
      %p165 = scmp.eq.s32.totalorder %s24, 0
      %p166 = por %p164, %p165
      %s168 = sadd.s32 %s167, 1
      %p171 = scmp.eq.s32.totalorder %s18, 1
      %p172 = scmp.ne.s32.totalorder %s167, %s169
      %p173 = scmp.eq.s32.totalorder %s18, 0
      %p174 = por %p172, %p173
      %p175 = scmp.ne.s32.totalorder %s167, %s169
      %p176 = scmp.eq.s32.totalorder %s23, 1
      %p177 = por %p175, %p176
      %p178 = scmp.ne.s32.totalorder %s169, %s170
      %p179 = scmp.eq.s32.totalorder %s23, 0
      %p180 = por %p178, %p179
      %p181 = scmp.ne.s32.totalorder %s169, %s170
      %p182 = scmp.eq.s32.totalorder %s24, 1
      %p183 = por %p181, %p182
      %p185 = scmp.ne.s32.totalorder %s170, %s184
      %p186 = scmp.eq.s32.totalorder %s24, 0
      %p187 = por %p185, %p186
      %s189 = sadd.s32 %s188, 1
      %p192 = scmp.eq.s32.totalorder %s18, 1
      %p193 = scmp.ne.s32.totalorder %s188, %s190
      %p194 = scmp.eq.s32.totalorder %s18, 0
      %p195 = por %p193, %p194
      %p196 = scmp.ne.s32.totalorder %s188, %s190
      %p197 = scmp.eq.s32.totalorder %s23, 1
      %p198 = por %p196, %p197
      %p199 = scmp.ne.s32.totalorder %s190, %s191
      %p200 = scmp.eq.s32.totalorder %s23, 0
      %p201 = por %p199, %p200
      %p202 = scmp.ne.s32.totalorder %s190, %s191
      %p203 = scmp.eq.s32.totalorder %s24, 1
      %p204 = por %p202, %p203
      %p206 = scmp.ne.s32.totalorder %s191, %s205
      %p207 = scmp.eq.s32.totalorder %s24, 0
      %p208 = por %p206, %p207
      %s210 = sadd.s32 %s209, 1
      %p213 = scmp.eq.s32.totalorder %s18, 1
      %p214 = scmp.ne.s32.totalorder %s209, %s211
      %p215 = scmp.eq.s32.totalorder %s18, 0
      %p216 = por %p214, %p215
      %p217 = scmp.ne.s32.totalorder %s209, %s211
      %p218 = scmp.eq.s32.totalorder %s23, 1
      %p219 = por %p217, %p218
      %p220 = scmp.ne.s32.totalorder %s211, %s212
      %p221 = scmp.eq.s32.totalorder %s23, 0
      %p222 = por %p220, %p221
      %p223 = scmp.ne.s32.totalorder %s211, %s212
      %p224 = scmp.eq.s32.totalorder %s24, 1
      %p225 = por %p223, %p224
      %p227 = scmp.ne.s32.totalorder %s212, %s226
      %p228 = scmp.eq.s32.totalorder %s24, 0
      %p229 = por %p227, %p228
      %s230 = ssub.s32 %s18, %s25
      %p231 = scmp.eq.s32.totalorder %s230, 0
      %s233 = sadd.s32 %s232, 1
      %s234 = scalar_select %p231, %s232, %s233
      %p237 = pneg %p231
      %p238 = scmp.eq.s32.totalorder %s18, 1
      %p239 = por %p237, %p238
      %p240 = scmp.ne.s32.totalorder %s232, %s235
      %p241 = scmp.eq.s32.totalorder %s18, 0
      %p242 = por %p240, %p241
      %p243 = scmp.ne.s32.totalorder %s232, %s235
      %p244 = scmp.eq.s32.totalorder %s23, 1
      %p245 = por %p243, %p244
      %p246 = scmp.ne.s32.totalorder %s235, %s236
      %p247 = scmp.eq.s32.totalorder %s23, 0
      %p248 = por %p246, %p247
      %p249 = scmp.ne.s32.totalorder %s235, %s236
      %p250 = scmp.eq.s32.totalorder %s24, 1
      %p251 = por %p249, %p250
      %p253 = scmp.ne.s32.totalorder %s236, %s252
      %p254 = scmp.eq.s32.totalorder %s24, 0
      %p255 = por %p253, %p254
      %p256 = scmp.le.s32.totalorder 1, %s18
      %p257 = scmp.lt.s32.totalorder %s18, 3
      %p258 = pnand %p256, %p257
      %p259 = pneg %p258
      // Predicated region
      $region9: #{tpu_custom_call.1} parent=5 // pred_check
        _
      $region10: #{tpu_custom_call.1} parent=5 // pred_check_branch
        %261 = sbr.rel (%p258) target = $region12
      $region11: #{tpu_custom_call.1} parent=5 // pred_region
        %s262 = ssub.s32 %s18, 1
        // Predicated region
        $region13: #{tpu_custom_call.1} parent=11 // pred_check
          %p263 = pneg %p117
        $region14: #{tpu_custom_call.1} parent=11 // pred_check_branch
          %265 = sbr.rel (%p263) target = $region16
        $region15: #{tpu_custom_call.1} parent=11 // pred_region
          _
        $region16: #{tpu_custom_call.1} parent=11 // pred_fallthru
          _
        // Predicated region
        $region17: #{tpu_custom_call.1} parent=11 // pred_check
          %p266 = pneg %p138
        $region18: #{tpu_custom_call.1} parent=11 // pred_check_branch
          %268 = sbr.rel (%p266) target = $region20
        $region19: #{tpu_custom_call.1} parent=11 // pred_region
          _
        $region20: #{tpu_custom_call.1} parent=11 // pred_fallthru
          _
        // Predicated region
        $region21: #{tpu_custom_call.1} parent=11 // pred_check
          %p269 = pneg %p159
        $region22: #{tpu_custom_call.1} parent=11 // pred_check_branch
          %271 = sbr.rel (%p269) target = $region24
        $region23: #{tpu_custom_call.1} parent=11 // pred_region
          _
        $region24: #{tpu_custom_call.1} parent=11 // pred_fallthru
          _
        // Predicated region
        $region25: #{tpu_custom_call.1} parent=11 // pred_check
          %p272 = pneg %p180
        $region26: #{tpu_custom_call.1} parent=11 // pred_check_branch
          %274 = sbr.rel (%p272) target = $region28
        $region27: #{tpu_custom_call.1} parent=11 // pred_region
          _
        $region28: #{tpu_custom_call.1} parent=11 // pred_fallthru
          _
        // Predicated region
        $region29: #{tpu_custom_call.1} parent=11 // pred_check
          %p275 = pneg %p201
        $region30: #{tpu_custom_call.1} parent=11 // pred_check_branch
          %277 = sbr.rel (%p275) target = $region32
        $region31: #{tpu_custom_call.1} parent=11 // pred_region
          _
        $region32: #{tpu_custom_call.1} parent=11 // pred_fallthru
          _
        // Predicated region
        $region33: #{tpu_custom_call.1} parent=11 // pred_check
          %p278 = pneg %p222
        $region34: #{tpu_custom_call.1} parent=11 // pred_check_branch
          %280 = sbr.rel (%p278) target = $region36
        $region35: #{tpu_custom_call.1} parent=11 // pred_region
          _
        $region36: #{tpu_custom_call.1} parent=11 // pred_fallthru
          _
      $region12: #{tpu_custom_call.1} parent=5 // pred_fallthru
        _
      %p281 = scmp.lt.s32.totalorder %s18, 2
      // Predicated region
      $region37: #{tpu_custom_call.1} parent=5 // pred_check
        %p282 = pneg %p281
      $region38: #{tpu_custom_call.1} parent=5 // pred_check_branch
        %284 = sbr.rel (%p282) target = $region40
      $region39: #{tpu_custom_call.1} parent=5 // pred_region
        // Predicated region
        $region41: #{tpu_custom_call.1} parent=39 // pred_check
          %p285 = pneg %p38
        $region42: #{tpu_custom_call.1} parent=39 // pred_check_branch
          %287 = sbr.rel (%p285) target = $region44
        $region43: #{tpu_custom_call.1} parent=39 // pred_region
          %p288 = scmp.lt.s32.totalorder %s18, 1
          %s289 = scalar_select %p288, %s18, 1
          %s290 = smul.addr %s289, 8
          %s291 = scalar_lea.vmem %s0, %s290
        $region44: #{tpu_custom_call.1} parent=39 // pred_fallthru
          _
        // Predicated region
        $region45: #{tpu_custom_call.1} parent=39 // pred_check
          %p292 = pneg %p64
        $region46: #{tpu_custom_call.1} parent=39 // pred_check_branch
          %294 = sbr.rel (%p292) target = $region48
        $region47: #{tpu_custom_call.1} parent=39 // pred_region
          %p295 = scmp.lt.s32.totalorder %s18, 1
          %s296 = scalar_select %p295, %s18, 1
          %s297 = smul.addr %s296, 8
          %s298 = scalar_lea.vmem %s1, %s297
        $region48: #{tpu_custom_call.1} parent=39 // pred_fallthru
          _
        // Predicated region
        $region49: #{tpu_custom_call.1} parent=39 // pred_check
          %p299 = pneg %p90
        $region50: #{tpu_custom_call.1} parent=39 // pred_check_branch
          %301 = sbr.rel (%p299) target = $region52
        $region51: #{tpu_custom_call.1} parent=39 // pred_region
          %p302 = scmp.lt.s32.totalorder %s18, 1
          %s303 = scalar_select %p302, %s18, 1
          %s304 = scalar_lea.vmem %s2, %s303
        $region52: #{tpu_custom_call.1} parent=39 // pred_fallthru
          _
      $region40: #{tpu_custom_call.1} parent=5 // pred_fallthru
        _
      %p305 = scmp.le.s32.totalorder 1, %s18
      %p306 = scmp.lt.s32.totalorder %s18, 3
      %p307 = pnand %p305, %p306
      %p308 = pneg %p307
      // Predicated region
      $region53: #{tpu_custom_call.1} parent=5 // pred_check
        _
      $region54: #{tpu_custom_call.1} parent=5 // pred_check_branch
        %310 = sbr.rel (%p307) target = $region56
      $region55: #{tpu_custom_call.1} parent=5 // pred_region
        %s311 = ssub.s32 %s18, 1
        %p312 = scmp.lt.s32.totalorder %s23, 1
        %s313 = scalar_select %p312, %s23, 1
        %s314 = smul.addr %s313, 8
        %s315 = scalar_lea.vmem %s0, %s314
        %p316 = pneg %p44
        %p317 = pneg %p41
        %p318 = scmp.lt.s32.totalorder %s23, 1
        %s319 = scalar_select %p318, %s23, 1
        %s320 = smul.addr %s319, 8
        %s321 = scalar_lea.vmem %s1, %s320
        %p322 = pneg %p70
        %p323 = pneg %p67
        %p324 = scmp.lt.s32.totalorder %s23, 1
        %s325 = scalar_select %p324, %s23, 1
        %s326 = scalar_lea.vmem %s2, %s325
        %p327 = pneg %p96
        %p328 = pneg %p93
        %p329 = pneg %p117
        %p330 = pneg %p114
        %p331 = pneg %p138
        %p332 = pneg %p135
        %p333 = pneg %p159
        %p334 = pneg %p156
        %p335 = pneg %p180
        %p336 = pneg %p177
        %p337 = pneg %p201
        %p338 = pneg %p198
        %p339 = pneg %p222
        %p340 = pneg %p219
        %p341 = pneg %p248
        %p342 = pneg %p245
        %s343 = sand.u32 %s235, 1
        %s344 = scalar_lea.sflag [#allocation3], %s343
        %s345 = sand.u32 %s235, 1
        %s346 = smul.addr %s345, 8
        %s347 = scalar_lea.vmem [#allocation2], %s346
        %p348 = scmp.lt.s32.totalorder %s23, 1
        %s349 = scalar_select %p348, %s23, 1
        %s350 = smul.addr %s349, 8
        %s351 = scalar_lea.vmem %s0, %s350
        %p352 = scmp.lt.s32.totalorder %s23, 1
        %s353 = scalar_select %p352, %s23, 1
        %s354 = smul.addr %s353, 8
        %s355 = scalar_lea.vmem %s1, %s354
        %p356 = scmp.lt.s32.totalorder %s23, 1
        %s357 = scalar_select %p356, %s23, 1
        %s358 = scalar_lea.vmem %s2, %s357
        %v360 = vld [vmem:[%s351] sm:$0xff]
        %v361 = vld [vmem:[%s355] sm:$0xff]
        %v362 = vpack.c.bf16 %v360, %v360
        %v363 = vpack.c.bf16 %v361, %v361
        %v364 = vld [vmem:[%s3] sm:$0xf]
        %v365 = vld [vmem:[%s3 + $0x4] sm:$0xf]
        %v366 = vld [vmem:[%s3 + $0x8] sm:$0xf]
        %v367 = vld [vmem:[%s3 + $0xc] sm:$0xf]
        %v368 = vld [vmem:[%s3 + $0x10] sm:$0xf]
        %v369 = vld [vmem:[%s3 + $0x14] sm:$0xf]
        %v370 = vld [vmem:[%s3 + $0x18] sm:$0xf]
        %v371 = vld [vmem:[%s3 + $0x1c] sm:$0xf]
        %v372 = vld [vmem:[%s3 + $0x20] sm:$0xf]
        %v373 = vld [vmem:[%s3 + $0x24] sm:$0xf]
        %v374 = vld [vmem:[%s3 + $0x28] sm:$0xf]
        %v375 = vld [vmem:[%s3 + $0x2c] sm:$0xf]
        %v376 = vld [vmem:[%s3 + $0x30] sm:$0xf]
        %v377 = vld [vmem:[%s3 + $0x34] sm:$0xf]
        %v378 = vld [vmem:[%s3 + $0x38] sm:$0xf]
        %v379 = vld [vmem:[%s3 + $0x3c] sm:$0xf]
        %v380 = vld [vmem:[%s6] sm:$0x1]
        %v381 = vld [vmem:[%s6 + $0x1] sm:$0x1]
        %v382 = vld [vmem:[%s6 + $0x2] sm:$0x1]
        %v383 = vld [vmem:[%s6 + $0x3] sm:$0x1]
        %v388 = vlaneseq
        %v389 = vshrl.u32 %v388, 7
        %v390 = vsub.s32 0, %v389
        %v391 = vrot.slane %v380, %v390
        %v392 = vlaneseq
        %v393 = vshrl.u32 %v392, 7
        %v394 = vsub.s32 0, %v393
        %v395 = vrot.slane %v381, %v394
        %v396 = vlaneseq
        %v397 = vshrl.u32 %v396, 7
        %v398 = vsub.s32 0, %v397
        %v399 = vrot.slane %v382, %v398
        %v400 = vlaneseq
        %v401 = vshrl.u32 %v400, 7
        %v402 = vsub.s32 0, %v401
        %v403 = vrot.slane %v383, %v402
        %v412 = vunpack.c.l.b16 %v364
        %v413 = vunpack.c.l.b16 %v365
        %v414 = vunpack.c.l.b16 %v366
        %v415 = vunpack.c.l.b16 %v367
        %v416 = vpack.c.b16 %v413, %v412
        %v417 = vpack.c.b16 %v415, %v414
        %vm420 = vcmask 261120
        %v422 = vsel %vm420, %v362, 0
        %424 = vmatprep.subr.bf16.mxu0 0
        %425 = vmatpush1.bf16.msra.mxu0 0
        %426 = vmatprep.subr.bf16.mxu0 0
        %427 = vmatpush1.bf16.msra.mxu0 0
        %428 = vmatprep.subr.bf16.mxu0 0
        %429 = vmatpush1.bf16.msra.mxu0 0
        %430 = vmatprep.subr.bf16.mxu0 0
        %431 = vmatpush1.bf16.msra.mxu0 0
        %432 = vmatprep.subr.bf16.mxu0 0
        %433 = vmatpush1.bf16.msra.mxu0 0
        %434 = vmatprep.subr.bf16.mxu0 0
        %435 = vmatpush1.bf16.msra.mxu0 0
        %436 = vmatprep.subr.bf16.mxu0 0
        %437 = vmatpush1.bf16.msra.mxu0 %v417
        %438 = vmatprep.subr.bf16.mxu0 0
        %439 = vmatpush1.bf16.msra.mxu0 %v416
        %440 = vmatprep.subr.bf16.mxu0 0
        %441 = vmatpush2.bf16.msra.mxu0 0
        %442 = vmatprep.subr.bf16.mxu0 0
        %443 = vmatpush2.bf16.msra.mxu0 0
        %444 = vmatprep.subr.bf16.mxu0 0
        %445 = vmatpush2.bf16.msra.mxu0 0
        %446 = vmatprep.subr.bf16.mxu0 0
        %447 = vmatpush2.bf16.msra.mxu0 0
        %448 = vmatprep.subr.bf16.mxu0 0
        %449 = vmatpush2.bf16.msra.mxu0 0
        %450 = vmatprep.subr.bf16.mxu0 0
        %451 = vmatpush2.bf16.msra.mxu0 0
        %452 = vmatprep.subr.bf16.mxu0 0
        %453 = vmatpush2.bf16.msra.mxu0 0
        %454 = vmatprep.subr.bf16.mxu0 0
        %455 = vmatpush2.bf16.msra.mxu0 0
        %456 = vmatprep.mubr.bf16.mxu0 0
        %457 = vmatmul.mubr.bf16.gmra.mxu0 %v422
        %v458 = vpop.f32.mrf.mxu0
        %v459 = vadd.f32 %v391, %v458
        %v460 = vpop.f32.mrf.mxu0
        %v461 = vpop.f32.mrf.mxu0
        %v462 = vpop.f32.mrf.mxu0
        %463 = vdwg.mxu0
        %v468 = vunpack.c.l.b16 %v368
        %v469 = vunpack.c.l.b16 %v369
        %v470 = vunpack.c.l.b16 %v370
        %v471 = vunpack.c.l.b16 %v371
        %v472 = vpack.c.b16 %v469, %v468
        %v473 = vpack.c.b16 %v471, %v470
        %476 = vmatprep.subr.bf16.mxu0 0
        %477 = vmatpush1.bf16.msra.mxu0 0
        %478 = vmatprep.subr.bf16.mxu0 0
        %479 = vmatpush1.bf16.msra.mxu0 0
        %480 = vmatprep.subr.bf16.mxu0 0
        %481 = vmatpush1.bf16.msra.mxu0 0
        %482 = vmatprep.subr.bf16.mxu0 0
        %483 = vmatpush1.bf16.msra.mxu0 0
        %484 = vmatprep.subr.bf16.mxu0 0
        %485 = vmatpush1.bf16.msra.mxu0 0
        %486 = vmatprep.subr.bf16.mxu0 0
        %487 = vmatpush1.bf16.msra.mxu0 0
        %488 = vmatprep.subr.bf16.mxu0 0
        %489 = vmatpush1.bf16.msra.mxu0 %v473
        %490 = vmatprep.subr.bf16.mxu0 0
        %491 = vmatpush1.bf16.msra.mxu0 %v472
        %492 = vmatprep.subr.bf16.mxu0 0
        %493 = vmatpush2.bf16.msra.mxu0 0
        %494 = vmatprep.subr.bf16.mxu0 0
        %495 = vmatpush2.bf16.msra.mxu0 0
        %496 = vmatprep.subr.bf16.mxu0 0
        %497 = vmatpush2.bf16.msra.mxu0 0
        %498 = vmatprep.subr.bf16.mxu0 0
        %499 = vmatpush2.bf16.msra.mxu0 0
        %500 = vmatprep.subr.bf16.mxu0 0
        %501 = vmatpush2.bf16.msra.mxu0 0
        %502 = vmatprep.subr.bf16.mxu0 0
        %503 = vmatpush2.bf16.msra.mxu0 0
        %504 = vmatprep.subr.bf16.mxu0 0
        %505 = vmatpush2.bf16.msra.mxu0 0
        %506 = vmatprep.subr.bf16.mxu0 0
        %507 = vmatpush2.bf16.msra.mxu0 0
        %508 = vmatprep.mubr.bf16.mxu0 0
        %509 = vmatmul.mubr.bf16.gmra.mxu0 %v422
        %v510 = vpop.f32.mrf.mxu0
        %v511 = vadd.f32 %v395, %v510
        %v512 = vpop.f32.mrf.mxu0
        %v513 = vpop.f32.mrf.mxu0
        %v514 = vpop.f32.mrf.mxu0
        %515 = vdwg.mxu0
        %v520 = vunpack.c.l.b16 %v372
        %v521 = vunpack.c.l.b16 %v373
        %v522 = vunpack.c.l.b16 %v374
        %v523 = vunpack.c.l.b16 %v375
        %v524 = vpack.c.b16 %v521, %v520
        %v525 = vpack.c.b16 %v523, %v522
        %528 = vmatprep.subr.bf16.mxu0 0
        %529 = vmatpush1.bf16.msra.mxu0 0
        %530 = vmatprep.subr.bf16.mxu0 0
        %531 = vmatpush1.bf16.msra.mxu0 0
        %532 = vmatprep.subr.bf16.mxu0 0
        %533 = vmatpush1.bf16.msra.mxu0 0
        %534 = vmatprep.subr.bf16.mxu0 0
        %535 = vmatpush1.bf16.msra.mxu0 0
        %536 = vmatprep.subr.bf16.mxu0 0
        %537 = vmatpush1.bf16.msra.mxu0 0
        %538 = vmatprep.subr.bf16.mxu0 0
        %539 = vmatpush1.bf16.msra.mxu0 0
        %540 = vmatprep.subr.bf16.mxu0 0
        %541 = vmatpush1.bf16.msra.mxu0 %v525
        %542 = vmatprep.subr.bf16.mxu0 0
        %543 = vmatpush1.bf16.msra.mxu0 %v524
        %544 = vmatprep.subr.bf16.mxu0 0
        %545 = vmatpush2.bf16.msra.mxu0 0
        %546 = vmatprep.subr.bf16.mxu0 0
        %547 = vmatpush2.bf16.msra.mxu0 0
        %548 = vmatprep.subr.bf16.mxu0 0
        %549 = vmatpush2.bf16.msra.mxu0 0
        %550 = vmatprep.subr.bf16.mxu0 0
        %551 = vmatpush2.bf16.msra.mxu0 0
        %552 = vmatprep.subr.bf16.mxu0 0
        %553 = vmatpush2.bf16.msra.mxu0 0
        %554 = vmatprep.subr.bf16.mxu0 0
        %555 = vmatpush2.bf16.msra.mxu0 0
        %556 = vmatprep.subr.bf16.mxu0 0
        %557 = vmatpush2.bf16.msra.mxu0 0
        %558 = vmatprep.subr.bf16.mxu0 0
        %559 = vmatpush2.bf16.msra.mxu0 0
        %560 = vmatprep.mubr.bf16.mxu0 0
        %561 = vmatmul.mubr.bf16.gmra.mxu0 %v422
        %v562 = vpop.f32.mrf.mxu0
        %v563 = vadd.f32 %v399, %v562
        %v564 = vpop.f32.mrf.mxu0
        %v565 = vpop.f32.mrf.mxu0
        %v566 = vpop.f32.mrf.mxu0
        %567 = vdwg.mxu0
        %v572 = vunpack.c.l.b16 %v376
        %v573 = vunpack.c.l.b16 %v377
        %v574 = vunpack.c.l.b16 %v378
        %v575 = vunpack.c.l.b16 %v379
        %v576 = vpack.c.b16 %v573, %v572
        %v577 = vpack.c.b16 %v575, %v574
        %580 = vmatprep.subr.bf16.mxu0 0
        %581 = vmatpush1.bf16.msra.mxu0 0
        %582 = vmatprep.subr.bf16.mxu0 0
        %583 = vmatpush1.bf16.msra.mxu0 0
        %584 = vmatprep.subr.bf16.mxu0 0
        %585 = vmatpush1.bf16.msra.mxu0 0
        %586 = vmatprep.subr.bf16.mxu0 0
        %587 = vmatpush1.bf16.msra.mxu0 0
        %588 = vmatprep.subr.bf16.mxu0 0
        %589 = vmatpush1.bf16.msra.mxu0 0
        %590 = vmatprep.subr.bf16.mxu0 0
        %591 = vmatpush1.bf16.msra.mxu0 0
        %592 = vmatprep.subr.bf16.mxu0 0
        %593 = vmatpush1.bf16.msra.mxu0 %v577
        %594 = vmatprep.subr.bf16.mxu0 0
        %595 = vmatpush1.bf16.msra.mxu0 %v576
        %596 = vmatprep.subr.bf16.mxu0 0
        %597 = vmatpush2.bf16.msra.mxu0 0
        %598 = vmatprep.subr.bf16.mxu0 0
        %599 = vmatpush2.bf16.msra.mxu0 0
        %600 = vmatprep.subr.bf16.mxu0 0
        %601 = vmatpush2.bf16.msra.mxu0 0
        %602 = vmatprep.subr.bf16.mxu0 0
        %603 = vmatpush2.bf16.msra.mxu0 0
        %604 = vmatprep.subr.bf16.mxu0 0
        %605 = vmatpush2.bf16.msra.mxu0 0
        %606 = vmatprep.subr.bf16.mxu0 0
        %607 = vmatpush2.bf16.msra.mxu0 0
        %608 = vmatprep.subr.bf16.mxu0 0
        %609 = vmatpush2.bf16.msra.mxu0 0
        %610 = vmatprep.subr.bf16.mxu0 0
        %611 = vmatpush2.bf16.msra.mxu0 0
        %612 = vmatprep.mubr.bf16.mxu0 0
        %613 = vmatmul.mubr.bf16.gmra.mxu0 %v422
        %v614 = vpop.f32.mrf.mxu0
        %v615 = vadd.f32 %v403, %v614
        %v616 = vpop.f32.mrf.mxu0
        %v617 = vpop.f32.mrf.mxu0
        %v618 = vpop.f32.mrf.mxu0
        %619 = vdwg.mxu0
        %v620 = vld [vmem:[%s4] sm:$0xf]
        %v621 = vld [vmem:[%s4 + $0x4] sm:$0xf]
        %v622 = vld [vmem:[%s4 + $0x8] sm:$0xf]
        %v623 = vld [vmem:[%s4 + $0xc] sm:$0xf]
        %v624 = vld [vmem:[%s4 + $0x10] sm:$0xf]
        %v625 = vld [vmem:[%s4 + $0x14] sm:$0xf]
        %v626 = vld [vmem:[%s4 + $0x18] sm:$0xf]
        %v627 = vld [vmem:[%s4 + $0x1c] sm:$0xf]
        %v628 = vld [vmem:[%s4 + $0x20] sm:$0xf]
        %v629 = vld [vmem:[%s4 + $0x24] sm:$0xf]
        %v630 = vld [vmem:[%s4 + $0x28] sm:$0xf]
        %v631 = vld [vmem:[%s4 + $0x2c] sm:$0xf]
        %v632 = vld [vmem:[%s4 + $0x30] sm:$0xf]
        %v633 = vld [vmem:[%s4 + $0x34] sm:$0xf]
        %v634 = vld [vmem:[%s4 + $0x38] sm:$0xf]
        %v635 = vld [vmem:[%s4 + $0x3c] sm:$0xf]
        %v636 = vld [vmem:[%s4 + $0x40] sm:$0xf]
        %v637 = vld [vmem:[%s4 + $0x44] sm:$0xf]
        %v638 = vld [vmem:[%s4 + $0x48] sm:$0xf]
        %v639 = vld [vmem:[%s4 + $0x4c] sm:$0xf]
        %v640 = vld [vmem:[%s4 + $0x50] sm:$0xf]
        %v641 = vld [vmem:[%s4 + $0x54] sm:$0xf]
        %v642 = vld [vmem:[%s4 + $0x58] sm:$0xf]
        %v643 = vld [vmem:[%s4 + $0x5c] sm:$0xf]
        %v644 = vld [vmem:[%s4 + $0x60] sm:$0xf]
        %v645 = vld [vmem:[%s4 + $0x64] sm:$0xf]
        %v646 = vld [vmem:[%s4 + $0x68] sm:$0xf]
        %v647 = vld [vmem:[%s4 + $0x6c] sm:$0xf]
        %v648 = vld [vmem:[%s4 + $0x70] sm:$0xf]
        %v649 = vld [vmem:[%s4 + $0x74] sm:$0xf]
        %v650 = vld [vmem:[%s4 + $0x78] sm:$0xf]
        %v651 = vld [vmem:[%s4 + $0x7c] sm:$0xf]
        %v652 = vld [vmem:[%s7] sm:$0x1]
        %v653 = vld [vmem:[%s7 + $0x1] sm:$0x1]
        %v654 = vld [vmem:[%s7 + $0x2] sm:$0x1]
        %v655 = vld [vmem:[%s7 + $0x3] sm:$0x1]
        %v656 = vld [vmem:[%s7 + $0x4] sm:$0x1]
        %v657 = vld [vmem:[%s7 + $0x5] sm:$0x1]
        %v658 = vld [vmem:[%s7 + $0x6] sm:$0x1]
        %v659 = vld [vmem:[%s7 + $0x7] sm:$0x1]
        %v668 = vlaneseq
        %v669 = vshrl.u32 %v668, 7
        %v670 = vsub.s32 0, %v669
        %v671 = vrot.slane %v652, %v670
        %v672 = vlaneseq
        %v673 = vshrl.u32 %v672, 7
        %v674 = vsub.s32 0, %v673
        %v675 = vrot.slane %v653, %v674
        %v676 = vlaneseq
        %v677 = vshrl.u32 %v676, 7
        %v678 = vsub.s32 0, %v677
        %v679 = vrot.slane %v654, %v678
        %v680 = vlaneseq
        %v681 = vshrl.u32 %v680, 7
        %v682 = vsub.s32 0, %v681
        %v683 = vrot.slane %v655, %v682
        %v684 = vlaneseq
        %v685 = vshrl.u32 %v684, 7
        %v686 = vsub.s32 0, %v685
        %v687 = vrot.slane %v656, %v686
        %v688 = vlaneseq
        %v689 = vshrl.u32 %v688, 7
        %v690 = vsub.s32 0, %v689
        %v691 = vrot.slane %v657, %v690
        %v692 = vlaneseq
        %v693 = vshrl.u32 %v692, 7
        %v694 = vsub.s32 0, %v693
        %v695 = vrot.slane %v658, %v694
        %v696 = vlaneseq
        %v697 = vshrl.u32 %v696, 7
        %v698 = vsub.s32 0, %v697
        %v699 = vrot.slane %v659, %v698
        %v712 = vunpack.c.l.b16 %v620
        %v713 = vunpack.c.l.b16 %v621
        %v714 = vunpack.c.l.b16 %v622
        %v715 = vunpack.c.l.b16 %v623
        %v716 = vpack.c.b16 %v713, %v712
        %v717 = vpack.c.b16 %v715, %v714
        %v721 = vsel %vm420, %v363, 0
        %723 = vmatprep.subr.bf16.mxu0 0
        %724 = vmatpush1.bf16.msra.mxu0 0
        %725 = vmatprep.subr.bf16.mxu0 0
        %726 = vmatpush1.bf16.msra.mxu0 0
        %727 = vmatprep.subr.bf16.mxu0 0
        %728 = vmatpush1.bf16.msra.mxu0 0
        %729 = vmatprep.subr.bf16.mxu0 0
        %730 = vmatpush1.bf16.msra.mxu0 0
        %731 = vmatprep.subr.bf16.mxu0 0
        %732 = vmatpush1.bf16.msra.mxu0 0
        %733 = vmatprep.subr.bf16.mxu0 0
        %734 = vmatpush1.bf16.msra.mxu0 0
        %735 = vmatprep.subr.bf16.mxu0 0
        %736 = vmatpush1.bf16.msra.mxu0 %v717
        %737 = vmatprep.subr.bf16.mxu0 0
        %738 = vmatpush1.bf16.msra.mxu0 %v716
        %739 = vmatprep.subr.bf16.mxu0 0
        %740 = vmatpush2.bf16.msra.mxu0 0
        %741 = vmatprep.subr.bf16.mxu0 0
        %742 = vmatpush2.bf16.msra.mxu0 0
        %743 = vmatprep.subr.bf16.mxu0 0
        %744 = vmatpush2.bf16.msra.mxu0 0
        %745 = vmatprep.subr.bf16.mxu0 0
        %746 = vmatpush2.bf16.msra.mxu0 0
        %747 = vmatprep.subr.bf16.mxu0 0
        %748 = vmatpush2.bf16.msra.mxu0 0
        %749 = vmatprep.subr.bf16.mxu0 0
        %750 = vmatpush2.bf16.msra.mxu0 0
        %751 = vmatprep.subr.bf16.mxu0 0
        %752 = vmatpush2.bf16.msra.mxu0 0
        %753 = vmatprep.subr.bf16.mxu0 0
        %754 = vmatpush2.bf16.msra.mxu0 0
        %755 = vmatprep.mubr.bf16.mxu0 0
        %756 = vmatmul.mubr.bf16.gmra.mxu0 %v721
        %v757 = vpop.f32.mrf.mxu0
        %v758 = vadd.f32 %v671, %v757
        %v759 = vpop.f32.mrf.mxu0
        %v760 = vpop.f32.mrf.mxu0
        %v761 = vpop.f32.mrf.mxu0
        %762 = vdwg.mxu0
        %v767 = vunpack.c.l.b16 %v624
        %v768 = vunpack.c.l.b16 %v625
        %v769 = vunpack.c.l.b16 %v626
        %v770 = vunpack.c.l.b16 %v627
        %v771 = vpack.c.b16 %v768, %v767
        %v772 = vpack.c.b16 %v770, %v769
        %775 = vmatprep.subr.bf16.mxu0 0
        %776 = vmatpush1.bf16.msra.mxu0 0
        %777 = vmatprep.subr.bf16.mxu0 0
        %778 = vmatpush1.bf16.msra.mxu0 0
        %779 = vmatprep.subr.bf16.mxu0 0
        %780 = vmatpush1.bf16.msra.mxu0 0
        %781 = vmatprep.subr.bf16.mxu0 0
        %782 = vmatpush1.bf16.msra.mxu0 0
        %783 = vmatprep.subr.bf16.mxu0 0
        %784 = vmatpush1.bf16.msra.mxu0 0
        %785 = vmatprep.subr.bf16.mxu0 0
        %786 = vmatpush1.bf16.msra.mxu0 0
        %787 = vmatprep.subr.bf16.mxu0 0
        %788 = vmatpush1.bf16.msra.mxu0 %v772
        %789 = vmatprep.subr.bf16.mxu0 0
        %790 = vmatpush1.bf16.msra.mxu0 %v771
        %791 = vmatprep.subr.bf16.mxu0 0
        %792 = vmatpush2.bf16.msra.mxu0 0
        %793 = vmatprep.subr.bf16.mxu0 0
        %794 = vmatpush2.bf16.msra.mxu0 0
        %795 = vmatprep.subr.bf16.mxu0 0
        %796 = vmatpush2.bf16.msra.mxu0 0
        %797 = vmatprep.subr.bf16.mxu0 0
        %798 = vmatpush2.bf16.msra.mxu0 0
        %799 = vmatprep.subr.bf16.mxu0 0
        %800 = vmatpush2.bf16.msra.mxu0 0
        %801 = vmatprep.subr.bf16.mxu0 0
        %802 = vmatpush2.bf16.msra.mxu0 0
        %803 = vmatprep.subr.bf16.mxu0 0
        %804 = vmatpush2.bf16.msra.mxu0 0
        %805 = vmatprep.subr.bf16.mxu0 0
        %806 = vmatpush2.bf16.msra.mxu0 0
        %807 = vmatprep.mubr.bf16.mxu0 0
        %808 = vmatmul.mubr.bf16.gmra.mxu0 %v721
        %v809 = vpop.f32.mrf.mxu0
        %v810 = vadd.f32 %v675, %v809
        %v811 = vpop.f32.mrf.mxu0
        %v812 = vpop.f32.mrf.mxu0
        %v813 = vpop.f32.mrf.mxu0
        %814 = vdwg.mxu0
        %v819 = vunpack.c.l.b16 %v628
        %v820 = vunpack.c.l.b16 %v629
        %v821 = vunpack.c.l.b16 %v630
        %v822 = vunpack.c.l.b16 %v631
        %v823 = vpack.c.b16 %v820, %v819
        %v824 = vpack.c.b16 %v822, %v821
        %827 = vmatprep.subr.bf16.mxu0 0
        %828 = vmatpush1.bf16.msra.mxu0 0
        %829 = vmatprep.subr.bf16.mxu0 0
        %830 = vmatpush1.bf16.msra.mxu0 0
        %831 = vmatprep.subr.bf16.mxu0 0
        %832 = vmatpush1.bf16.msra.mxu0 0
        %833 = vmatprep.subr.bf16.mxu0 0
        %834 = vmatpush1.bf16.msra.mxu0 0
        %835 = vmatprep.subr.bf16.mxu0 0
        %836 = vmatpush1.bf16.msra.mxu0 0
        %837 = vmatprep.subr.bf16.mxu0 0
        %838 = vmatpush1.bf16.msra.mxu0 0
        %839 = vmatprep.subr.bf16.mxu0 0
        %840 = vmatpush1.bf16.msra.mxu0 %v824
        %841 = vmatprep.subr.bf16.mxu0 0
        %842 = vmatpush1.bf16.msra.mxu0 %v823
        %843 = vmatprep.subr.bf16.mxu0 0
        %844 = vmatpush2.bf16.msra.mxu0 0
        %845 = vmatprep.subr.bf16.mxu0 0
        %846 = vmatpush2.bf16.msra.mxu0 0
        %847 = vmatprep.subr.bf16.mxu0 0
        %848 = vmatpush2.bf16.msra.mxu0 0
        %849 = vmatprep.subr.bf16.mxu0 0
        %850 = vmatpush2.bf16.msra.mxu0 0
        %851 = vmatprep.subr.bf16.mxu0 0
        %852 = vmatpush2.bf16.msra.mxu0 0
        %853 = vmatprep.subr.bf16.mxu0 0
        %854 = vmatpush2.bf16.msra.mxu0 0
        %855 = vmatprep.subr.bf16.mxu0 0
        %856 = vmatpush2.bf16.msra.mxu0 0
        %857 = vmatprep.subr.bf16.mxu0 0
        %858 = vmatpush2.bf16.msra.mxu0 0
        %859 = vmatprep.mubr.bf16.mxu0 0
        %860 = vmatmul.mubr.bf16.gmra.mxu0 %v721
        %v861 = vpop.f32.mrf.mxu0
        %v862 = vadd.f32 %v679, %v861
        %v863 = vpop.f32.mrf.mxu0
        %v864 = vpop.f32.mrf.mxu0
        %v865 = vpop.f32.mrf.mxu0
        %866 = vdwg.mxu0
        %v871 = vunpack.c.l.b16 %v632
        %v872 = vunpack.c.l.b16 %v633
        %v873 = vunpack.c.l.b16 %v634
        %v874 = vunpack.c.l.b16 %v635
        %v875 = vpack.c.b16 %v872, %v871
        %v876 = vpack.c.b16 %v874, %v873
        %879 = vmatprep.subr.bf16.mxu0 0
        %880 = vmatpush1.bf16.msra.mxu0 0
        %881 = vmatprep.subr.bf16.mxu0 0
        %882 = vmatpush1.bf16.msra.mxu0 0
        %883 = vmatprep.subr.bf16.mxu0 0
        %884 = vmatpush1.bf16.msra.mxu0 0
        %885 = vmatprep.subr.bf16.mxu0 0
        %886 = vmatpush1.bf16.msra.mxu0 0
        %887 = vmatprep.subr.bf16.mxu0 0
        %888 = vmatpush1.bf16.msra.mxu0 0
        %889 = vmatprep.subr.bf16.mxu0 0
        %890 = vmatpush1.bf16.msra.mxu0 0
        %891 = vmatprep.subr.bf16.mxu0 0
        %892 = vmatpush1.bf16.msra.mxu0 %v876
        %893 = vmatprep.subr.bf16.mxu0 0
        %894 = vmatpush1.bf16.msra.mxu0 %v875
        %895 = vmatprep.subr.bf16.mxu0 0
        %896 = vmatpush2.bf16.msra.mxu0 0
        %897 = vmatprep.subr.bf16.mxu0 0
        %898 = vmatpush2.bf16.msra.mxu0 0
        %899 = vmatprep.subr.bf16.mxu0 0
        %900 = vmatpush2.bf16.msra.mxu0 0
        %901 = vmatprep.subr.bf16.mxu0 0
        %902 = vmatpush2.bf16.msra.mxu0 0
        %903 = vmatprep.subr.bf16.mxu0 0
        %904 = vmatpush2.bf16.msra.mxu0 0
        %905 = vmatprep.subr.bf16.mxu0 0
        %906 = vmatpush2.bf16.msra.mxu0 0
        %907 = vmatprep.subr.bf16.mxu0 0
        %908 = vmatpush2.bf16.msra.mxu0 0
        %909 = vmatprep.subr.bf16.mxu0 0
        %910 = vmatpush2.bf16.msra.mxu0 0
        %911 = vmatprep.mubr.bf16.mxu0 0
        %912 = vmatmul.mubr.bf16.gmra.mxu0 %v721
        %v913 = vpop.f32.mrf.mxu0
        %v914 = vadd.f32 %v683, %v913
        %v915 = vpop.f32.mrf.mxu0
        %v916 = vpop.f32.mrf.mxu0
        %v917 = vpop.f32.mrf.mxu0
        %918 = vdwg.mxu0
        %v923 = vunpack.c.l.b16 %v636
        %v924 = vunpack.c.l.b16 %v637
        %v925 = vunpack.c.l.b16 %v638
        %v926 = vunpack.c.l.b16 %v639
        %v927 = vpack.c.b16 %v924, %v923
        %v928 = vpack.c.b16 %v926, %v925
        %931 = vmatprep.subr.bf16.mxu0 0
        %932 = vmatpush1.bf16.msra.mxu0 0
        %933 = vmatprep.subr.bf16.mxu0 0
        %934 = vmatpush1.bf16.msra.mxu0 0
        %935 = vmatprep.subr.bf16.mxu0 0
        %936 = vmatpush1.bf16.msra.mxu0 0
        %937 = vmatprep.subr.bf16.mxu0 0
        %938 = vmatpush1.bf16.msra.mxu0 0
        %939 = vmatprep.subr.bf16.mxu0 0
        %940 = vmatpush1.bf16.msra.mxu0 0
        %941 = vmatprep.subr.bf16.mxu0 0
        %942 = vmatpush1.bf16.msra.mxu0 0
        %943 = vmatprep.subr.bf16.mxu0 0
        %944 = vmatpush1.bf16.msra.mxu0 %v928
        %945 = vmatprep.subr.bf16.mxu0 0
        %946 = vmatpush1.bf16.msra.mxu0 %v927
        %947 = vmatprep.subr.bf16.mxu0 0
        %948 = vmatpush2.bf16.msra.mxu0 0
        %949 = vmatprep.subr.bf16.mxu0 0
        %950 = vmatpush2.bf16.msra.mxu0 0
        %951 = vmatprep.subr.bf16.mxu0 0
        %952 = vmatpush2.bf16.msra.mxu0 0
        %953 = vmatprep.subr.bf16.mxu0 0
        %954 = vmatpush2.bf16.msra.mxu0 0
        %955 = vmatprep.subr.bf16.mxu0 0
        %956 = vmatpush2.bf16.msra.mxu0 0
        %957 = vmatprep.subr.bf16.mxu0 0
        %958 = vmatpush2.bf16.msra.mxu0 0
        %959 = vmatprep.subr.bf16.mxu0 0
        %960 = vmatpush2.bf16.msra.mxu0 0
        %961 = vmatprep.subr.bf16.mxu0 0
        %962 = vmatpush2.bf16.msra.mxu0 0
        %963 = vmatprep.mubr.bf16.mxu0 0
        %964 = vmatmul.mubr.bf16.gmra.mxu0 %v721
        %v965 = vpop.f32.mrf.mxu0
        %v966 = vadd.f32 %v687, %v965
        %v967 = vpop.f32.mrf.mxu0
        %v968 = vpop.f32.mrf.mxu0
        %v969 = vpop.f32.mrf.mxu0
        %970 = vdwg.mxu0
        %v975 = vunpack.c.l.b16 %v640
        %v976 = vunpack.c.l.b16 %v641
        %v977 = vunpack.c.l.b16 %v642
        %v978 = vunpack.c.l.b16 %v643
        %v979 = vpack.c.b16 %v976, %v975
        %v980 = vpack.c.b16 %v978, %v977
        %983 = vmatprep.subr.bf16.mxu0 0
        %984 = vmatpush1.bf16.msra.mxu0 0
        %985 = vmatprep.subr.bf16.mxu0 0
        %986 = vmatpush1.bf16.msra.mxu0 0
        %987 = vmatprep.subr.bf16.mxu0 0
        %988 = vmatpush1.bf16.msra.mxu0 0
        %989 = vmatprep.subr.bf16.mxu0 0
        %990 = vmatpush1.bf16.msra.mxu0 0
        %991 = vmatprep.subr.bf16.mxu0 0
        %992 = vmatpush1.bf16.msra.mxu0 0
        %993 = vmatprep.subr.bf16.mxu0 0
        %994 = vmatpush1.bf16.msra.mxu0 0
        %995 = vmatprep.subr.bf16.mxu0 0
        %996 = vmatpush1.bf16.msra.mxu0 %v980
        %997 = vmatprep.subr.bf16.mxu0 0
        %998 = vmatpush1.bf16.msra.mxu0 %v979
        %999 = vmatprep.subr.bf16.mxu0 0
        %1000 = vmatpush2.bf16.msra.mxu0 0
        %1001 = vmatprep.subr.bf16.mxu0 0
        %1002 = vmatpush2.bf16.msra.mxu0 0
        %1003 = vmatprep.subr.bf16.mxu0 0
        %1004 = vmatpush2.bf16.msra.mxu0 0
        %1005 = vmatprep.subr.bf16.mxu0 0
        %1006 = vmatpush2.bf16.msra.mxu0 0
        %1007 = vmatprep.subr.bf16.mxu0 0
        %1008 = vmatpush2.bf16.msra.mxu0 0
        %1009 = vmatprep.subr.bf16.mxu0 0
        %1010 = vmatpush2.bf16.msra.mxu0 0
        %1011 = vmatprep.subr.bf16.mxu0 0
        %1012 = vmatpush2.bf16.msra.mxu0 0
        %1013 = vmatprep.subr.bf16.mxu0 0
        %1014 = vmatpush2.bf16.msra.mxu0 0
        %1015 = vmatprep.mubr.bf16.mxu0 0
        %1016 = vmatmul.mubr.bf16.gmra.mxu0 %v721
        %v1017 = vpop.f32.mrf.mxu0
        %v1018 = vadd.f32 %v691, %v1017
        %v1019 = vpop.f32.mrf.mxu0
        %v1020 = vpop.f32.mrf.mxu0
        %v1021 = vpop.f32.mrf.mxu0
        %1022 = vdwg.mxu0
        %v1027 = vunpack.c.l.b16 %v644
        %v1028 = vunpack.c.l.b16 %v645
        %v1029 = vunpack.c.l.b16 %v646
        %v1030 = vunpack.c.l.b16 %v647
        %v1031 = vpack.c.b16 %v1028, %v1027
        %v1032 = vpack.c.b16 %v1030, %v1029
        %1035 = vmatprep.subr.bf16.mxu0 0
        %1036 = vmatpush1.bf16.msra.mxu0 0
        %1037 = vmatprep.subr.bf16.mxu0 0
        %1038 = vmatpush1.bf16.msra.mxu0 0
        %1039 = vmatprep.subr.bf16.mxu0 0
        %1040 = vmatpush1.bf16.msra.mxu0 0
        %1041 = vmatprep.subr.bf16.mxu0 0
        %1042 = vmatpush1.bf16.msra.mxu0 0
        %1043 = vmatprep.subr.bf16.mxu0 0
        %1044 = vmatpush1.bf16.msra.mxu0 0
        %1045 = vmatprep.subr.bf16.mxu0 0
        %1046 = vmatpush1.bf16.msra.mxu0 0
        %1047 = vmatprep.subr.bf16.mxu0 0
        %1048 = vmatpush1.bf16.msra.mxu0 %v1032
        %1049 = vmatprep.subr.bf16.mxu0 0
        %1050 = vmatpush1.bf16.msra.mxu0 %v1031
        %1051 = vmatprep.subr.bf16.mxu0 0
        %1052 = vmatpush2.bf16.msra.mxu0 0
        %1053 = vmatprep.subr.bf16.mxu0 0
        %1054 = vmatpush2.bf16.msra.mxu0 0
        %1055 = vmatprep.subr.bf16.mxu0 0
        %1056 = vmatpush2.bf16.msra.mxu0 0
        %1057 = vmatprep.subr.bf16.mxu0 0
        %1058 = vmatpush2.bf16.msra.mxu0 0
        %1059 = vmatprep.subr.bf16.mxu0 0
        %1060 = vmatpush2.bf16.msra.mxu0 0
        %1061 = vmatprep.subr.bf16.mxu0 0
        %1062 = vmatpush2.bf16.msra.mxu0 0
        %1063 = vmatprep.subr.bf16.mxu0 0
        %1064 = vmatpush2.bf16.msra.mxu0 0
        %1065 = vmatprep.subr.bf16.mxu0 0
        %1066 = vmatpush2.bf16.msra.mxu0 0
        %1067 = vmatprep.mubr.bf16.mxu0 0
        %1068 = vmatmul.mubr.bf16.gmra.mxu0 %v721
        %v1069 = vpop.f32.mrf.mxu0
        %v1070 = vadd.f32 %v695, %v1069
        %v1071 = vpop.f32.mrf.mxu0
        %v1072 = vpop.f32.mrf.mxu0
        %v1073 = vpop.f32.mrf.mxu0
        %1074 = vdwg.mxu0
        %v1079 = vunpack.c.l.b16 %v648
        %v1080 = vunpack.c.l.b16 %v649
        %v1081 = vunpack.c.l.b16 %v650
        %v1082 = vunpack.c.l.b16 %v651
        %v1083 = vpack.c.b16 %v1080, %v1079
        %v1084 = vpack.c.b16 %v1082, %v1081
        %1087 = vmatprep.subr.bf16.mxu0 0
        %1088 = vmatpush1.bf16.msra.mxu0 0
        %1089 = vmatprep.subr.bf16.mxu0 0
        %1090 = vmatpush1.bf16.msra.mxu0 0
        %1091 = vmatprep.subr.bf16.mxu0 0
        %1092 = vmatpush1.bf16.msra.mxu0 0
        %1093 = vmatprep.subr.bf16.mxu0 0
        %1094 = vmatpush1.bf16.msra.mxu0 0
        %1095 = vmatprep.subr.bf16.mxu0 0
        %1096 = vmatpush1.bf16.msra.mxu0 0
        %1097 = vmatprep.subr.bf16.mxu0 0
        %1098 = vmatpush1.bf16.msra.mxu0 0
        %1099 = vmatprep.subr.bf16.mxu0 0
        %1100 = vmatpush1.bf16.msra.mxu0 %v1084
        %1101 = vmatprep.subr.bf16.mxu0 0
        %1102 = vmatpush1.bf16.msra.mxu0 %v1083
        %1103 = vmatprep.subr.bf16.mxu0 0
        %1104 = vmatpush2.bf16.msra.mxu0 0
        %1105 = vmatprep.subr.bf16.mxu0 0
        %1106 = vmatpush2.bf16.msra.mxu0 0
        %1107 = vmatprep.subr.bf16.mxu0 0
        %1108 = vmatpush2.bf16.msra.mxu0 0
        %1109 = vmatprep.subr.bf16.mxu0 0
        %1110 = vmatpush2.bf16.msra.mxu0 0
        %1111 = vmatprep.subr.bf16.mxu0 0
        %1112 = vmatpush2.bf16.msra.mxu0 0
        %1113 = vmatprep.subr.bf16.mxu0 0
        %1114 = vmatpush2.bf16.msra.mxu0 0
        %1115 = vmatprep.subr.bf16.mxu0 0
        %1116 = vmatpush2.bf16.msra.mxu0 0
        %1117 = vmatprep.subr.bf16.mxu0 0
        %1118 = vmatpush2.bf16.msra.mxu0 0
        %1119 = vmatprep.mubr.bf16.mxu0 0
        %1120 = vmatmul.mubr.bf16.gmra.mxu0 %v721
        %v1121 = vpop.f32.mrf.mxu0
        %v1122 = vadd.f32 %v699, %v1121
        %v1123 = vpop.f32.mrf.mxu0
        %v1124 = vpop.f32.mrf.mxu0
        %v1125 = vpop.f32.mrf.mxu0
        %1126 = vdwg.mxu0
        %v1127 = vmul.f32 %v459, 0.35355338
        %v1128 = vmul.f32 %v511, 0.35355338
        %v1129 = vmul.f32 %v563, 0.35355338
        %v1130 = vmul.f32 %v615, 0.35355338
        %v1131 = vpack.c.bf16 %v1127, %v1127
        %v1132 = vpack.c.bf16 %v1128, %v1128
        %v1133 = vpack.c.bf16 %v1129, %v1129
        %v1134 = vpack.c.bf16 %v1130, %v1130
        %v1135 = vpack.c.bf16 %v758, %v758
        %v1136 = vpack.c.bf16 %v810, %v810
        %v1137 = vpack.c.bf16 %v862, %v862
        %v1138 = vpack.c.bf16 %v914, %v914
        %v1139 = vld [vmem:[%s358] sm:$0x1]
        %vm1140 = vcmp.eq.f32.partialorder %v1139, 0.0
        %v1141 = vsel %vm1140, -1e+09, 0.0
        %v1143 = vlaneseq
        %v1144 = vshrl.u32 %v1143, 7
        %v1145 = vsub.s32 0, %v1144
        %v1146 = vrot.slane %v1141, %v1145
        %vm1148 = vcmask 64512
        %v1150 = vsel %vm1148, %v1131, 0
        %v1153 = vsel %vm1148, %v1135, 0
        %1155 = vmatprep.subr.bf16.mxu0 0
        %1156 = vmatpush1.bf16.xpose.msra.mxu0 0
        %1157 = vmatprep.subr.bf16.mxu0 0
        %1158 = vmatpush1.bf16.xpose.msra.mxu0 0
        %1159 = vmatprep.subr.bf16.mxu0 0
        %1160 = vmatpush1.bf16.xpose.msra.mxu0 0
        %1161 = vmatprep.subr.bf16.mxu0 0
        %1162 = vmatpush1.bf16.xpose.msra.mxu0 0
        %1163 = vmatprep.subr.bf16.mxu0 0
        %1164 = vmatpush1.bf16.xpose.msra.mxu0 0
        %1165 = vmatprep.subr.bf16.mxu0 0
        %1166 = vmatpush1.bf16.xpose.msra.mxu0 0
        %1167 = vmatprep.subr.bf16.mxu0 0
        %1168 = vmatpush1.bf16.xpose.msra.mxu0 0
        %1169 = vmatprep.subr.bf16.mxu0 0
        %1170 = vmatpush1.bf16.xpose.msra.mxu0 %v1153
        %1171 = vmatprep.subr.bf16.mxu0 0
        %1172 = vmatpush2.bf16.xpose.msra.mxu0 0
        %1173 = vmatprep.subr.bf16.mxu0 0
        %1174 = vmatpush2.bf16.xpose.msra.mxu0 0
        %1175 = vmatprep.subr.bf16.mxu0 0
        %1176 = vmatpush2.bf16.xpose.msra.mxu0 0
        %1177 = vmatprep.subr.bf16.mxu0 0
        %1178 = vmatpush2.bf16.xpose.msra.mxu0 0
        %1179 = vmatprep.subr.bf16.mxu0 0
        %1180 = vmatpush2.bf16.xpose.msra.mxu0 0
        %1181 = vmatprep.subr.bf16.mxu0 0
        %1182 = vmatpush2.bf16.xpose.msra.mxu0 0
        %1183 = vmatprep.subr.bf16.mxu0 0
        %1184 = vmatpush2.bf16.xpose.msra.mxu0 0
        %1185 = vmatprep.subr.bf16.mxu0 0
        %1186 = vmatpush2.bf16.xpose.msra.mxu0 0
        %1187 = vmatprep.mubr.bf16.mxu0 0
        %1188 = vmatmul.mubr.bf16.gmra.mxu0 %v1150
        %v1189 = vpop.f32.mrf.mxu0
        %v1190 = vadd.f32 %v1146, %v1189
        %v1191 = vpop.f32.mrf.mxu0
        %v1192 = vpop.f32.mrf.mxu0
        %v1193 = vpop.f32.mrf.mxu0
        %1194 = vdwg.mxu0
        %v1196 = vsel %vm1148, %v1132, 0
        %v1199 = vsel %vm1148, %v1136, 0
        %1201 = vmatprep.subr.bf16.mxu0 0
        %1202 = vmatpush1.bf16.xpose.msra.mxu0 0
        %1203 = vmatprep.subr.bf16.mxu0 0
        %1204 = vmatpush1.bf16.xpose.msra.mxu0 0
        %1205 = vmatprep.subr.bf16.mxu0 0
        %1206 = vmatpush1.bf16.xpose.msra.mxu0 0
        %1207 = vmatprep.subr.bf16.mxu0 0
        %1208 = vmatpush1.bf16.xpose.msra.mxu0 0
        %1209 = vmatprep.subr.bf16.mxu0 0
        %1210 = vmatpush1.bf16.xpose.msra.mxu0 0
        %1211 = vmatprep.subr.bf16.mxu0 0
        %1212 = vmatpush1.bf16.xpose.msra.mxu0 0
        %1213 = vmatprep.subr.bf16.mxu0 0
        %1214 = vmatpush1.bf16.xpose.msra.mxu0 0
        %1215 = vmatprep.subr.bf16.mxu0 0
        %1216 = vmatpush1.bf16.xpose.msra.mxu0 %v1199
        %1217 = vmatprep.subr.bf16.mxu0 0
        %1218 = vmatpush2.bf16.xpose.msra.mxu0 0
        %1219 = vmatprep.subr.bf16.mxu0 0
        %1220 = vmatpush2.bf16.xpose.msra.mxu0 0
        %1221 = vmatprep.subr.bf16.mxu0 0
        %1222 = vmatpush2.bf16.xpose.msra.mxu0 0
        %1223 = vmatprep.subr.bf16.mxu0 0
        %1224 = vmatpush2.bf16.xpose.msra.mxu0 0
        %1225 = vmatprep.subr.bf16.mxu0 0
        %1226 = vmatpush2.bf16.xpose.msra.mxu0 0
        %1227 = vmatprep.subr.bf16.mxu0 0
        %1228 = vmatpush2.bf16.xpose.msra.mxu0 0
        %1229 = vmatprep.subr.bf16.mxu0 0
        %1230 = vmatpush2.bf16.xpose.msra.mxu0 0
        %1231 = vmatprep.subr.bf16.mxu0 0
        %1232 = vmatpush2.bf16.xpose.msra.mxu0 0
        %1233 = vmatprep.mubr.bf16.mxu0 0
        %1234 = vmatmul.mubr.bf16.gmra.mxu0 %v1196
        %v1235 = vpop.f32.mrf.mxu0
        %v1236 = vadd.f32 %v1146, %v1235
        %v1237 = vpop.f32.mrf.mxu0
        %v1238 = vpop.f32.mrf.mxu0
        %v1239 = vpop.f32.mrf.mxu0
        %1240 = vdwg.mxu0
        %v1242 = vsel %vm1148, %v1133, 0
        %v1245 = vsel %vm1148, %v1137, 0
        %1247 = vmatprep.subr.bf16.mxu0 0
        %1248 = vmatpush1.bf16.xpose.msra.mxu0 0
        %1249 = vmatprep.subr.bf16.mxu0 0
        %1250 = vmatpush1.bf16.xpose.msra.mxu0 0
        %1251 = vmatprep.subr.bf16.mxu0 0
        %1252 = vmatpush1.bf16.xpose.msra.mxu0 0
        %1253 = vmatprep.subr.bf16.mxu0 0
        %1254 = vmatpush1.bf16.xpose.msra.mxu0 0
        %1255 = vmatprep.subr.bf16.mxu0 0
        %1256 = vmatpush1.bf16.xpose.msra.mxu0 0
        %1257 = vmatprep.subr.bf16.mxu0 0
        %1258 = vmatpush1.bf16.xpose.msra.mxu0 0
        %1259 = vmatprep.subr.bf16.mxu0 0
        %1260 = vmatpush1.bf16.xpose.msra.mxu0 0
        %1261 = vmatprep.subr.bf16.mxu0 0
        %1262 = vmatpush1.bf16.xpose.msra.mxu0 %v1245
        %1263 = vmatprep.subr.bf16.mxu0 0
        %1264 = vmatpush2.bf16.xpose.msra.mxu0 0
        %1265 = vmatprep.subr.bf16.mxu0 0
        %1266 = vmatpush2.bf16.xpose.msra.mxu0 0
        %1267 = vmatprep.subr.bf16.mxu0 0
        %1268 = vmatpush2.bf16.xpose.msra.mxu0 0
        %1269 = vmatprep.subr.bf16.mxu0 0
        %1270 = vmatpush2.bf16.xpose.msra.mxu0 0
        %1271 = vmatprep.subr.bf16.mxu0 0
        %1272 = vmatpush2.bf16.xpose.msra.mxu0 0
        %1273 = vmatprep.subr.bf16.mxu0 0
        %1274 = vmatpush2.bf16.xpose.msra.mxu0 0
        %1275 = vmatprep.subr.bf16.mxu0 0
        %1276 = vmatpush2.bf16.xpose.msra.mxu0 0
        %1277 = vmatprep.subr.bf16.mxu0 0
        %1278 = vmatpush2.bf16.xpose.msra.mxu0 0
        %1279 = vmatprep.mubr.bf16.mxu0 0
        %1280 = vmatmul.mubr.bf16.gmra.mxu0 %v1242
        %v1281 = vpop.f32.mrf.mxu0
        %v1282 = vadd.f32 %v1146, %v1281
        %v1283 = vpop.f32.mrf.mxu0
        %v1284 = vpop.f32.mrf.mxu0
        %v1285 = vpop.f32.mrf.mxu0
        %1286 = vdwg.mxu0
        %v1288 = vsel %vm1148, %v1134, 0
        %v1291 = vsel %vm1148, %v1138, 0
        %1293 = vmatprep.subr.bf16.mxu0 0
        %1294 = vmatpush1.bf16.xpose.msra.mxu0 0
        %1295 = vmatprep.subr.bf16.mxu0 0
        %1296 = vmatpush1.bf16.xpose.msra.mxu0 0
        %1297 = vmatprep.subr.bf16.mxu0 0
        %1298 = vmatpush1.bf16.xpose.msra.mxu0 0
        %1299 = vmatprep.subr.bf16.mxu0 0
        %1300 = vmatpush1.bf16.xpose.msra.mxu0 0
        %1301 = vmatprep.subr.bf16.mxu0 0
        %1302 = vmatpush1.bf16.xpose.msra.mxu0 0
        %1303 = vmatprep.subr.bf16.mxu0 0
        %1304 = vmatpush1.bf16.xpose.msra.mxu0 0
        %1305 = vmatprep.subr.bf16.mxu0 0
        %1306 = vmatpush1.bf16.xpose.msra.mxu0 0
        %1307 = vmatprep.subr.bf16.mxu0 0
        %1308 = vmatpush1.bf16.xpose.msra.mxu0 %v1291
        %1309 = vmatprep.subr.bf16.mxu0 0
        %1310 = vmatpush2.bf16.xpose.msra.mxu0 0
        %1311 = vmatprep.subr.bf16.mxu0 0
        %1312 = vmatpush2.bf16.xpose.msra.mxu0 0
        %1313 = vmatprep.subr.bf16.mxu0 0
        %1314 = vmatpush2.bf16.xpose.msra.mxu0 0
        %1315 = vmatprep.subr.bf16.mxu0 0
        %1316 = vmatpush2.bf16.xpose.msra.mxu0 0
        %1317 = vmatprep.subr.bf16.mxu0 0
        %1318 = vmatpush2.bf16.xpose.msra.mxu0 0
        %1319 = vmatprep.subr.bf16.mxu0 0
        %1320 = vmatpush2.bf16.xpose.msra.mxu0 0
        %1321 = vmatprep.subr.bf16.mxu0 0
        %1322 = vmatpush2.bf16.xpose.msra.mxu0 0
        %1323 = vmatprep.subr.bf16.mxu0 0
        %1324 = vmatpush2.bf16.xpose.msra.mxu0 0
        %1325 = vmatprep.mubr.bf16.mxu0 0
        %1326 = vmatmul.mubr.bf16.gmra.mxu0 %v1288
        %v1327 = vpop.f32.mrf.mxu0
        %v1328 = vadd.f32 %v1146, %v1327
        %v1329 = vpop.f32.mrf.mxu0
        %v1330 = vpop.f32.mrf.mxu0
        %v1331 = vpop.f32.mrf.mxu0
        %1332 = vdwg.mxu0
        %v1333 = vsel %vm1148, %v1190, -inf
        %1334 = vmax.xlane.f32.xlu0 %v1333
        %v1335 = vpop.xlane.xlu0 %1334
        %v1336 = vsel %vm1148, %v1236, -inf
        %1337 = vmax.xlane.f32.xlu0 %v1336
        %v1338 = vpop.xlane.xlu0 %1337
        %v1339 = vsel %vm1148, %v1282, -inf
        %1340 = vmax.xlane.f32.xlu0 %v1339
        %v1341 = vpop.xlane.xlu0 %1340
        %v1342 = vsel %vm1148, %v1328, -inf
        %1343 = vmax.xlane.f32.xlu0 %v1342
        %v1344 = vpop.xlane.xlu0 %1343
        %v1345 = vsub.f32 %v1190, %v1335
        %v1346 = vsub.f32 %v1236, %v1338
        %v1347 = vsub.f32 %v1282, %v1341
        %v1348 = vsub.f32 %v1328, %v1344
        %v1349 = vmul.f32 %v1345, 1.442695
        %v1350 = vpow.pop %v1349
        %v1351 = vmul.f32 %v1346, 1.442695
        %v1352 = vpow.pop %v1351
        %v1353 = vmul.f32 %v1347, 1.442695
        %v1354 = vpow.pop %v1353
        %v1355 = vmul.f32 %v1348, 1.442695
        %v1356 = vpow.pop %v1355
        %v1357 = vsel %vm1148, %v1350, 0.0
        %1358 = vadd.xlane.f32.xlu0 %v1357
        %v1359 = vpop.xlane.xlu0 %1358
        %v1360 = vsel %vm1148, %v1352, 0.0
        %1361 = vadd.xlane.f32.xlu0 %v1360
        %v1362 = vpop.xlane.xlu0 %1361
        %v1363 = vsel %vm1148, %v1354, 0.0
        %1364 = vadd.xlane.f32.xlu0 %v1363
        %v1365 = vpop.xlane.xlu0 %1364
        %v1366 = vsel %vm1148, %v1356, 0.0
        %1367 = vadd.xlane.f32.xlu0 %v1366
        %v1368 = vpop.xlane.xlu0 %1367
        %v1369 = vrcp.pop %v1359
        %v1370 = vrcp.pop %v1362
        %v1371 = vrcp.pop %v1365
        %v1372 = vrcp.pop %v1368
        %v1373 = vmul.f32 %v1350, %v1369
        %v1374 = vmul.f32 %v1352, %v1370
        %v1375 = vmul.f32 %v1354, %v1371
        %v1376 = vmul.f32 %v1356, %v1372
        %v1377 = vpack.c.bf16 %v1373, %v1373
        %v1378 = vpack.c.bf16 %v1374, %v1374
        %v1379 = vpack.c.bf16 %v1375, %v1375
        %v1380 = vpack.c.bf16 %v1376, %v1376
        %v1381 = vpack.c.bf16 %v966, %v966
        %v1382 = vpack.c.bf16 %v1018, %v1018
        %v1383 = vpack.c.bf16 %v1070, %v1070
        %v1384 = vpack.c.bf16 %v1122, %v1122
        %v1386 = vsel %vm1148, %v1377, 0
        %vm1388 = vcmask 1043456
        %v1390 = vsel %vm1388, %v1381, 0
        %1392 = vmatprep.subr.bf16.mxu0 0
        %1393 = vmatpush1.bf16.msra.mxu0 0
        %1394 = vmatprep.subr.bf16.mxu0 0
        %1395 = vmatpush1.bf16.msra.mxu0 0
        %1396 = vmatprep.subr.bf16.mxu0 0
        %1397 = vmatpush1.bf16.msra.mxu0 0
        %1398 = vmatprep.subr.bf16.mxu0 0
        %1399 = vmatpush1.bf16.msra.mxu0 0
        %1400 = vmatprep.subr.bf16.mxu0 0
        %1401 = vmatpush1.bf16.msra.mxu0 0
        %1402 = vmatprep.subr.bf16.mxu0 0
        %1403 = vmatpush1.bf16.msra.mxu0 0
        %1404 = vmatprep.subr.bf16.mxu0 0
        %1405 = vmatpush1.bf16.msra.mxu0 0
        %1406 = vmatprep.subr.bf16.mxu0 0
        %1407 = vmatpush1.bf16.msra.mxu0 %v1390
        %1408 = vmatprep.subr.bf16.mxu0 0
        %1409 = vmatpush2.bf16.msra.mxu0 0
        %1410 = vmatprep.subr.bf16.mxu0 0
        %1411 = vmatpush2.bf16.msra.mxu0 0
        %1412 = vmatprep.subr.bf16.mxu0 0
        %1413 = vmatpush2.bf16.msra.mxu0 0
        %1414 = vmatprep.subr.bf16.mxu0 0
        %1415 = vmatpush2.bf16.msra.mxu0 0
        %1416 = vmatprep.subr.bf16.mxu0 0
        %1417 = vmatpush2.bf16.msra.mxu0 0
        %1418 = vmatprep.subr.bf16.mxu0 0
        %1419 = vmatpush2.bf16.msra.mxu0 0
        %1420 = vmatprep.subr.bf16.mxu0 0
        %1421 = vmatpush2.bf16.msra.mxu0 0
        %1422 = vmatprep.subr.bf16.mxu0 0
        %1423 = vmatpush2.bf16.msra.mxu0 0
        %1424 = vmatprep.mubr.bf16.mxu0 0
        %1425 = vmatmul.mubr.bf16.gmra.mxu0 %v1386
        %v1426 = vpop.f32.mrf.mxu0
        %v1427 = vadd.f32 0.0, %v1426
        %v1428 = vpop.f32.mrf.mxu0
        %v1429 = vpop.f32.mrf.mxu0
        %v1430 = vpop.f32.mrf.mxu0
        %1431 = vdwg.mxu0
        %v1433 = vsel %vm1148, %v1378, 0
        %v1436 = vsel %vm1388, %v1382, 0
        %1438 = vmatprep.subr.bf16.mxu0 0
        %1439 = vmatpush1.bf16.msra.mxu0 0
        %1440 = vmatprep.subr.bf16.mxu0 0
        %1441 = vmatpush1.bf16.msra.mxu0 0
        %1442 = vmatprep.subr.bf16.mxu0 0
        %1443 = vmatpush1.bf16.msra.mxu0 0
        %1444 = vmatprep.subr.bf16.mxu0 0
        %1445 = vmatpush1.bf16.msra.mxu0 0
        %1446 = vmatprep.subr.bf16.mxu0 0
        %1447 = vmatpush1.bf16.msra.mxu0 0
        %1448 = vmatprep.subr.bf16.mxu0 0
        %1449 = vmatpush1.bf16.msra.mxu0 0
        %1450 = vmatprep.subr.bf16.mxu0 0
        %1451 = vmatpush1.bf16.msra.mxu0 0
        %1452 = vmatprep.subr.bf16.mxu0 0
        %1453 = vmatpush1.bf16.msra.mxu0 %v1436
        %1454 = vmatprep.subr.bf16.mxu0 0
        %1455 = vmatpush2.bf16.msra.mxu0 0
        %1456 = vmatprep.subr.bf16.mxu0 0
        %1457 = vmatpush2.bf16.msra.mxu0 0
        %1458 = vmatprep.subr.bf16.mxu0 0
        %1459 = vmatpush2.bf16.msra.mxu0 0
        %1460 = vmatprep.subr.bf16.mxu0 0
        %1461 = vmatpush2.bf16.msra.mxu0 0
        %1462 = vmatprep.subr.bf16.mxu0 0
        %1463 = vmatpush2.bf16.msra.mxu0 0
        %1464 = vmatprep.subr.bf16.mxu0 0
        %1465 = vmatpush2.bf16.msra.mxu0 0
        %1466 = vmatprep.subr.bf16.mxu0 0
        %1467 = vmatpush2.bf16.msra.mxu0 0
        %1468 = vmatprep.subr.bf16.mxu0 0
        %1469 = vmatpush2.bf16.msra.mxu0 0
        %1470 = vmatprep.mubr.bf16.mxu0 0
        %1471 = vmatmul.mubr.bf16.gmra.mxu0 %v1433
        %v1472 = vpop.f32.mrf.mxu0
        %v1473 = vadd.f32 0.0, %v1472
        %v1474 = vpop.f32.mrf.mxu0
        %v1475 = vpop.f32.mrf.mxu0
        %v1476 = vpop.f32.mrf.mxu0
        %1477 = vdwg.mxu0
        %v1479 = vsel %vm1148, %v1379, 0
        %v1482 = vsel %vm1388, %v1383, 0
        %1484 = vmatprep.subr.bf16.mxu0 0
        %1485 = vmatpush1.bf16.msra.mxu0 0
        %1486 = vmatprep.subr.bf16.mxu0 0
        %1487 = vmatpush1.bf16.msra.mxu0 0
        %1488 = vmatprep.subr.bf16.mxu0 0
        %1489 = vmatpush1.bf16.msra.mxu0 0
        %1490 = vmatprep.subr.bf16.mxu0 0
        %1491 = vmatpush1.bf16.msra.mxu0 0
        %1492 = vmatprep.subr.bf16.mxu0 0
        %1493 = vmatpush1.bf16.msra.mxu0 0
        %1494 = vmatprep.subr.bf16.mxu0 0
        %1495 = vmatpush1.bf16.msra.mxu0 0
        %1496 = vmatprep.subr.bf16.mxu0 0
        %1497 = vmatpush1.bf16.msra.mxu0 0
        %1498 = vmatprep.subr.bf16.mxu0 0
        %1499 = vmatpush1.bf16.msra.mxu0 %v1482
        %1500 = vmatprep.subr.bf16.mxu0 0
        %1501 = vmatpush2.bf16.msra.mxu0 0
        %1502 = vmatprep.subr.bf16.mxu0 0
        %1503 = vmatpush2.bf16.msra.mxu0 0
        %1504 = vmatprep.subr.bf16.mxu0 0
        %1505 = vmatpush2.bf16.msra.mxu0 0
        %1506 = vmatprep.subr.bf16.mxu0 0
        %1507 = vmatpush2.bf16.msra.mxu0 0
        %1508 = vmatprep.subr.bf16.mxu0 0
        %1509 = vmatpush2.bf16.msra.mxu0 0
        %1510 = vmatprep.subr.bf16.mxu0 0
        %1511 = vmatpush2.bf16.msra.mxu0 0
        %1512 = vmatprep.subr.bf16.mxu0 0
        %1513 = vmatpush2.bf16.msra.mxu0 0
        %1514 = vmatprep.subr.bf16.mxu0 0
        %1515 = vmatpush2.bf16.msra.mxu0 0
        %1516 = vmatprep.mubr.bf16.mxu0 0
        %1517 = vmatmul.mubr.bf16.gmra.mxu0 %v1479
        %v1518 = vpop.f32.mrf.mxu0
        %v1519 = vadd.f32 0.0, %v1518
        %v1520 = vpop.f32.mrf.mxu0
        %v1521 = vpop.f32.mrf.mxu0
        %v1522 = vpop.f32.mrf.mxu0
        %1523 = vdwg.mxu0
        %v1525 = vsel %vm1148, %v1380, 0
        %v1528 = vsel %vm1388, %v1384, 0
        %1530 = vmatprep.subr.bf16.mxu0 0
        %1531 = vmatpush1.bf16.msra.mxu0 0
        %1532 = vmatprep.subr.bf16.mxu0 0
        %1533 = vmatpush1.bf16.msra.mxu0 0
        %1534 = vmatprep.subr.bf16.mxu0 0
        %1535 = vmatpush1.bf16.msra.mxu0 0
        %1536 = vmatprep.subr.bf16.mxu0 0
        %1537 = vmatpush1.bf16.msra.mxu0 0
        %1538 = vmatprep.subr.bf16.mxu0 0
        %1539 = vmatpush1.bf16.msra.mxu0 0
        %1540 = vmatprep.subr.bf16.mxu0 0
        %1541 = vmatpush1.bf16.msra.mxu0 0
        %1542 = vmatprep.subr.bf16.mxu0 0
        %1543 = vmatpush1.bf16.msra.mxu0 0
        %1544 = vmatprep.subr.bf16.mxu0 0
        %1545 = vmatpush1.bf16.msra.mxu0 %v1528
        %1546 = vmatprep.subr.bf16.mxu0 0
        %1547 = vmatpush2.bf16.msra.mxu0 0
        %1548 = vmatprep.subr.bf16.mxu0 0
        %1549 = vmatpush2.bf16.msra.mxu0 0
        %1550 = vmatprep.subr.bf16.mxu0 0
        %1551 = vmatpush2.bf16.msra.mxu0 0
        %1552 = vmatprep.subr.bf16.mxu0 0
        %1553 = vmatpush2.bf16.msra.mxu0 0
        %1554 = vmatprep.subr.bf16.mxu0 0
        %1555 = vmatpush2.bf16.msra.mxu0 0
        %1556 = vmatprep.subr.bf16.mxu0 0
        %1557 = vmatpush2.bf16.msra.mxu0 0
        %1558 = vmatprep.subr.bf16.mxu0 0
        %1559 = vmatpush2.bf16.msra.mxu0 0
        %1560 = vmatprep.subr.bf16.mxu0 0
        %1561 = vmatpush2.bf16.msra.mxu0 0
        %1562 = vmatprep.mubr.bf16.mxu0 0
        %1563 = vmatmul.mubr.bf16.gmra.mxu0 %v1525
        %v1564 = vpop.f32.mrf.mxu0
        %v1565 = vadd.f32 0.0, %v1564
        %v1566 = vpop.f32.mrf.mxu0
        %v1567 = vpop.f32.mrf.mxu0
        %v1568 = vpop.f32.mrf.mxu0
        %1569 = vdwg.mxu0
        %v1570 = vpack.c.bf16 %v1427, %v1427
        %v1571 = vpack.c.bf16 %v1473, %v1473
        %v1572 = vpack.c.bf16 %v1519, %v1519
        %v1573 = vpack.c.bf16 %v1565, %v1565
        %v1574 = vld [vmem:[%s5] sm:$0xf]
        %v1575 = vld [vmem:[%s5 + $0x4] sm:$0xf]
        %v1576 = vld [vmem:[%s5 + $0x8] sm:$0xf]
        %v1577 = vld [vmem:[%s5 + $0xc] sm:$0xf]
        %v1579 = vsel %vm1148, %v1570, 0
        %v1582 = vsel %vm1388, %v1574, 0
        %1584 = vmatprep.subr.bf16.mxu0 0
        %1585 = vmatpush1.bf16.msra.mxu0 0
        %1586 = vmatprep.subr.bf16.mxu0 0
        %1587 = vmatpush1.bf16.msra.mxu0 0
        %1588 = vmatprep.subr.bf16.mxu0 0
        %1589 = vmatpush1.bf16.msra.mxu0 0
        %1590 = vmatprep.subr.bf16.mxu0 0
        %1591 = vmatpush1.bf16.msra.mxu0 0
        %1592 = vmatprep.subr.bf16.mxu0 0
        %1593 = vmatpush1.bf16.msra.mxu0 0
        %1594 = vmatprep.subr.bf16.mxu0 0
        %1595 = vmatpush1.bf16.msra.mxu0 0
        %1596 = vmatprep.subr.bf16.mxu0 0
        %1597 = vmatpush1.bf16.msra.mxu0 0
        %1598 = vmatprep.subr.bf16.mxu0 0
        %1599 = vmatpush1.bf16.msra.mxu0 %v1582
        %1600 = vmatprep.subr.bf16.mxu0 0
        %1601 = vmatpush2.bf16.msra.mxu0 0
        %1602 = vmatprep.subr.bf16.mxu0 0
        %1603 = vmatpush2.bf16.msra.mxu0 0
        %1604 = vmatprep.subr.bf16.mxu0 0
        %1605 = vmatpush2.bf16.msra.mxu0 0
        %1606 = vmatprep.subr.bf16.mxu0 0
        %1607 = vmatpush2.bf16.msra.mxu0 0
        %1608 = vmatprep.subr.bf16.mxu0 0
        %1609 = vmatpush2.bf16.msra.mxu0 0
        %1610 = vmatprep.subr.bf16.mxu0 0
        %1611 = vmatpush2.bf16.msra.mxu0 0
        %1612 = vmatprep.subr.bf16.mxu0 0
        %1613 = vmatpush2.bf16.msra.mxu0 0
        %1614 = vmatprep.subr.bf16.mxu0 0
        %1615 = vmatpush2.bf16.msra.mxu0 0
        %1616 = vmatprep.mubr.bf16.mxu0 0
        %1617 = vmatmul.mubr.bf16.gmra.mxu0 %v1579
        %v1618 = vpop.f32.mrf.mxu0
        %v1619 = vadd.f32 0.0, %v1618
        %v1620 = vpop.f32.mrf.mxu0
        %v1621 = vpop.f32.mrf.mxu0
        %v1622 = vpop.f32.mrf.mxu0
        %1623 = vdwg.mxu0
        %v1625 = vsel %vm1148, %v1571, 0
        %v1628 = vsel %vm1388, %v1575, 0
        %1630 = vmatprep.subr.bf16.mxu0 0
        %1631 = vmatpush1.bf16.msra.mxu0 0
        %1632 = vmatprep.subr.bf16.mxu0 0
        %1633 = vmatpush1.bf16.msra.mxu0 0
        %1634 = vmatprep.subr.bf16.mxu0 0
        %1635 = vmatpush1.bf16.msra.mxu0 0
        %1636 = vmatprep.subr.bf16.mxu0 0
        %1637 = vmatpush1.bf16.msra.mxu0 0
        %1638 = vmatprep.subr.bf16.mxu0 0
        %1639 = vmatpush1.bf16.msra.mxu0 0
        %1640 = vmatprep.subr.bf16.mxu0 0
        %1641 = vmatpush1.bf16.msra.mxu0 0
        %1642 = vmatprep.subr.bf16.mxu0 0
        %1643 = vmatpush1.bf16.msra.mxu0 0
        %1644 = vmatprep.subr.bf16.mxu0 0
        %1645 = vmatpush1.bf16.msra.mxu0 %v1628
        %1646 = vmatprep.subr.bf16.mxu0 0
        %1647 = vmatpush2.bf16.msra.mxu0 0
        %1648 = vmatprep.subr.bf16.mxu0 0
        %1649 = vmatpush2.bf16.msra.mxu0 0
        %1650 = vmatprep.subr.bf16.mxu0 0
        %1651 = vmatpush2.bf16.msra.mxu0 0
        %1652 = vmatprep.subr.bf16.mxu0 0
        %1653 = vmatpush2.bf16.msra.mxu0 0
        %1654 = vmatprep.subr.bf16.mxu0 0
        %1655 = vmatpush2.bf16.msra.mxu0 0
        %1656 = vmatprep.subr.bf16.mxu0 0
        %1657 = vmatpush2.bf16.msra.mxu0 0
        %1658 = vmatprep.subr.bf16.mxu0 0
        %1659 = vmatpush2.bf16.msra.mxu0 0
        %1660 = vmatprep.subr.bf16.mxu0 0
        %1661 = vmatpush2.bf16.msra.mxu0 0
        %1662 = vmatprep.mubr.bf16.mxu0 0
        %1663 = vmatmul.mubr.bf16.gmra.mxu0 %v1625
        %v1664 = vpop.f32.mrf.mxu0
        %v1665 = vadd.f32 0.0, %v1664
        %v1666 = vpop.f32.mrf.mxu0
        %v1667 = vpop.f32.mrf.mxu0
        %v1668 = vpop.f32.mrf.mxu0
        %1669 = vdwg.mxu0
        %v1671 = vsel %vm1148, %v1572, 0
        %v1674 = vsel %vm1388, %v1576, 0
        %1676 = vmatprep.subr.bf16.mxu0 0
        %1677 = vmatpush1.bf16.msra.mxu0 0
        %1678 = vmatprep.subr.bf16.mxu0 0
        %1679 = vmatpush1.bf16.msra.mxu0 0
        %1680 = vmatprep.subr.bf16.mxu0 0
        %1681 = vmatpush1.bf16.msra.mxu0 0
        %1682 = vmatprep.subr.bf16.mxu0 0
        %1683 = vmatpush1.bf16.msra.mxu0 0
        %1684 = vmatprep.subr.bf16.mxu0 0
        %1685 = vmatpush1.bf16.msra.mxu0 0
        %1686 = vmatprep.subr.bf16.mxu0 0
        %1687 = vmatpush1.bf16.msra.mxu0 0
        %1688 = vmatprep.subr.bf16.mxu0 0
        %1689 = vmatpush1.bf16.msra.mxu0 0
        %1690 = vmatprep.subr.bf16.mxu0 0
        %1691 = vmatpush1.bf16.msra.mxu0 %v1674
        %1692 = vmatprep.subr.bf16.mxu0 0
        %1693 = vmatpush2.bf16.msra.mxu0 0
        %1694 = vmatprep.subr.bf16.mxu0 0
        %1695 = vmatpush2.bf16.msra.mxu0 0
        %1696 = vmatprep.subr.bf16.mxu0 0
        %1697 = vmatpush2.bf16.msra.mxu0 0
        %1698 = vmatprep.subr.bf16.mxu0 0
        %1699 = vmatpush2.bf16.msra.mxu0 0
        %1700 = vmatprep.subr.bf16.mxu0 0
        %1701 = vmatpush2.bf16.msra.mxu0 0
        %1702 = vmatprep.subr.bf16.mxu0 0
        %1703 = vmatpush2.bf16.msra.mxu0 0
        %1704 = vmatprep.subr.bf16.mxu0 0
        %1705 = vmatpush2.bf16.msra.mxu0 0
        %1706 = vmatprep.subr.bf16.mxu0 0
        %1707 = vmatpush2.bf16.msra.mxu0 0
        %1708 = vmatprep.mubr.bf16.mxu0 0
        %1709 = vmatmul.mubr.bf16.gmra.mxu0 %v1671
        %v1710 = vpop.f32.mrf.mxu0
        %v1711 = vadd.f32 0.0, %v1710
        %v1712 = vpop.f32.mrf.mxu0
        %v1713 = vpop.f32.mrf.mxu0
        %v1714 = vpop.f32.mrf.mxu0
        %1715 = vdwg.mxu0
        %v1717 = vsel %vm1148, %v1573, 0
        %v1720 = vsel %vm1388, %v1577, 0
        %1722 = vmatprep.subr.bf16.mxu0 0
        %1723 = vmatpush1.bf16.msra.mxu0 0
        %1724 = vmatprep.subr.bf16.mxu0 0
        %1725 = vmatpush1.bf16.msra.mxu0 0
        %1726 = vmatprep.subr.bf16.mxu0 0
        %1727 = vmatpush1.bf16.msra.mxu0 0
        %1728 = vmatprep.subr.bf16.mxu0 0
        %1729 = vmatpush1.bf16.msra.mxu0 0
        %1730 = vmatprep.subr.bf16.mxu0 0
        %1731 = vmatpush1.bf16.msra.mxu0 0
        %1732 = vmatprep.subr.bf16.mxu0 0
        %1733 = vmatpush1.bf16.msra.mxu0 0
        %1734 = vmatprep.subr.bf16.mxu0 0
        %1735 = vmatpush1.bf16.msra.mxu0 0
        %1736 = vmatprep.subr.bf16.mxu0 0
        %1737 = vmatpush1.bf16.msra.mxu0 %v1720
        %1738 = vmatprep.subr.bf16.mxu0 0
        %1739 = vmatpush2.bf16.msra.mxu0 0
        %1740 = vmatprep.subr.bf16.mxu0 0
        %1741 = vmatpush2.bf16.msra.mxu0 0
        %1742 = vmatprep.subr.bf16.mxu0 0
        %1743 = vmatpush2.bf16.msra.mxu0 0
        %1744 = vmatprep.subr.bf16.mxu0 0
        %1745 = vmatpush2.bf16.msra.mxu0 0
        %1746 = vmatprep.subr.bf16.mxu0 0
        %1747 = vmatpush2.bf16.msra.mxu0 0
        %1748 = vmatprep.subr.bf16.mxu0 0
        %1749 = vmatpush2.bf16.msra.mxu0 0
        %1750 = vmatprep.subr.bf16.mxu0 0
        %1751 = vmatpush2.bf16.msra.mxu0 0
        %1752 = vmatprep.subr.bf16.mxu0 0
        %1753 = vmatpush2.bf16.msra.mxu0 0
        %1754 = vmatprep.mubr.bf16.mxu0 0
        %1755 = vmatmul.mubr.bf16.gmra.mxu0 %v1717
        %v1756 = vpop.f32.mrf.mxu0
        %v1757 = vadd.f32 0.0, %v1756
        %v1758 = vpop.f32.mrf.mxu0
        %v1759 = vpop.f32.mrf.mxu0
        %v1760 = vpop.f32.mrf.mxu0
        %1761 = vdwg.mxu0
        %v1762 = vsel %vm420, %v1619, 0.0
        %v1763 = vsel %vm420, %v1665, 0.0
        %v1764 = vadd.f32 %v1762, %v1763
        %v1765 = vsel %vm420, %v1711, 0.0
        %v1766 = vadd.f32 %v1764, %v1765
        %v1767 = vsel %vm420, %v1757, 0.0
        %v1768 = vadd.f32 %v1766, %v1767
        %v1769 = vld [vmem:[%s8] sm:$0x1]
        %v1771 = vlaneseq
        %v1772 = vshrl.u32 %v1771, 7
        %v1773 = vsub.s32 0, %v1772
        %v1774 = vrot.slane %v1769, %v1773
        %v1776 = vadd.f32 %v1768, %v1774
        %1777 = vst.msk [vmem:[%s347] sm:$0xff] %vm420, %v1776
        %s1778 = sand.u32 %s235, 1
        %s1779 = scalar_lea.sflag [#allocation3], %s1778
        %s1780 = sand.u32 %s235, 1
        %s1781 = smul.addr %s1780, 8
        %s1782 = scalar_lea.vmem [#allocation2], %s1781
        // Predicated region
        $region57: #{tpu_custom_call.1} parent=55 // pred_check
          %p1783 = pneg %p245
        $region58: #{tpu_custom_call.1} parent=55 // pred_check_branch
          %1785 = sbr.rel (%p1783) target = $region60
        $region59: #{tpu_custom_call.1} parent=55 // pred_region
          %s1787 = ssub.s32 128, 128
          %1788 = vsyncadd %s1779, %s1787
          %s1789 = smul.addr %s23, 128
          %s1790 = scalar_lea.hbm %s9, %s1789
          %s1792 = sshll.u32 %s1782, 4
          %s1793 = int_to_ptr.vmem [resolvable:$true] %s1792
          %1795 = dma.vmem_to_hbm [thread:$0]  %s1793, 128, %s1790, %s1779
        $region60: #{tpu_custom_call.1} parent=55 // pred_fallthru
          _
      $region56: #{tpu_custom_call.1} parent=5 // pred_fallthru
        _
      %p1796 = scmp.le.s32.totalorder 2, %s18
      // Predicated region
      $region61: #{tpu_custom_call.1} parent=5 // pred_check
        %p1797 = pneg %p1796
      $region62: #{tpu_custom_call.1} parent=5 // pred_check_branch
        %1799 = sbr.rel (%p1797) target = $region64
      $region63: #{tpu_custom_call.1} parent=5 // pred_region
        %s1800 = ssub.s32 %s18, 2
        // Predicated region
        $region65: #{tpu_custom_call.1} parent=63 // pred_check
          %p1801 = pneg %p251
        $region66: #{tpu_custom_call.1} parent=63 // pred_check_branch
          %1803 = sbr.rel (%p1801) target = $region68
        $region67: #{tpu_custom_call.1} parent=63 // pred_region
          %s1804 = sand.u32 %s236, 1
          %s1805 = scalar_lea.sflag [#allocation3], %s1804
          %s1806 = sand.u32 %s236, 1
          %s1807 = smul.addr %s1806, 8
          %s1808 = scalar_lea.vmem [#allocation2], %s1807
          %1809 = dma.done %s1805, 128
        $region68: #{tpu_custom_call.1} parent=63 // pred_fallthru
          _
      $region64: #{tpu_custom_call.1} parent=5 // pred_fallthru
        _
    $region6: #{tpu_custom_call.1} parent=1 // loop_footer
      %s22 = sadd.s32 1, %s18
    $region7: #{tpu_custom_call.1} parent=1 // loop_footer_branch
      %17 = sbr.rel target = $region3
    $region8: #{tpu_custom_call.1} parent=1 // loop_exit
      _
    %1810 = vsyncpa [#allocation3], 1
    %s1811 = scalar_lea.sflag [#allocation3], 1
    %1812 = vsyncpa %s1811, 1

</llo_original>
